<compile_context>
chip_gen: v5e
topology: v5e:2x2
jax: 0.10.0
libtpu: 0.0.40
codegen_flags: <defaults>
</compile_context>

<pallas_src>
import jax
import jax.numpy as jnp
from jax.experimental import pallas as pl
from jax.experimental.pallas import tpu as pltpu

VOCAB_DIM = 15
HIDDEN_DIM = 1024
OUTPUT_DIM = 512
MAX_LEN = 25
NUM_LANGS = 10
LN_EPS = 1e-5
TILE_B_MAX = 512          # max batch tile (safe on v5e; sweep up to 1024 on v6e/v7x)
VMEM_LIMIT_BYTES = 48 * 1024 * 1024


# ----------------------------- Pallas kernel --------------------------------
def _mlp_ln_kernel(x_ref, w1_ref, b1_ref, g1_ref, be1_ref,
                   w2_ref, b2_ref, g2_ref, be2_ref, o_ref):
    x = x_ref[...]                                                   # [tb, 15] f32

    # Linear(vocab_dim -> hidden_dim): one-hot row select; tiny K, keep f32.
    h = jnp.dot(x, w1_ref[...], preferred_element_type=jnp.float32) + b1_ref[...]

    # LayerNorm(hidden_dim) — single pass: var = E[h^2] - mean^2
    mu = jnp.mean(h, axis=-1, keepdims=True)
    msq = jnp.mean(h * h, axis=-1, keepdims=True)
    var = jnp.maximum(msq - mu * mu, 0.0)
    h = (h - mu) * jax.lax.rsqrt(var + LN_EPS) * g1_ref[...] + be1_ref[...]

    # ReLU
    h = jnp.maximum(h, 0.0)

    # Linear(hidden_dim -> output_dim): bf16 x bf16 on the MXU, f32 accumulate.
    y = jnp.dot(h.astype(jnp.bfloat16), w2_ref[...],
                preferred_element_type=jnp.float32) + b2_ref[...]

    # LayerNorm(output_dim) — single pass.
    mu2 = jnp.mean(y, axis=-1, keepdims=True)
    msq2 = jnp.mean(y * y, axis=-1, keepdims=True)
    var2 = jnp.maximum(msq2 - mu2 * mu2, 0.0)
    out = (y - mu2) * jax.lax.rsqrt(var2 + LN_EPS) * g2_ref[...] + be2_ref[...]
    o_ref[...] = out.astype(o_ref.dtype)


def _round_up(n, m):
    return (n + m - 1) // m * m


def _choose_tiling(B):
    """Adaptive batch tiling.

    Keeps padding bounded by one sublane granule (8 rows) per tile, caps the
    tile at TILE_B_MAX, and guarantees >= 2 grid tiles whenever the batch has
    at least two sublane granules (so v7x megacore can split the grid).
    """
    b8 = _round_up(max(B, 1), 8)
    num_tiles = pl.cdiv(b8, TILE_B_MAX)
    if b8 >= 16:
        num_tiles = max(num_tiles, 2)
    tile_b = _round_up(pl.cdiv(b8, num_tiles), 8)
    bp = tile_b * num_tiles
    return tile_b, bp


def body_forward(text_features, params, out_dtype=jnp.float32):
    """Runs the nn.Sequential body on [B, vocab_dim] one-hot features."""
    B = text_features.shape[0]
    tile_b, Bp = _choose_tiling(B)
    if Bp != B:
        text_features = jnp.pad(text_features, ((0, Bp - B), (0, 0)))

    const = lambda i: (0, 0)
    grid_spec = pltpu.PrefetchScalarGridSpec(
        num_scalar_prefetch=0,
        grid=(Bp // tile_b,),
        in_specs=[
            pl.BlockSpec((tile_b, VOCAB_DIM), lambda i: (i, 0)),      # x tile
            pl.BlockSpec((VOCAB_DIM, HIDDEN_DIM), const),             # w1 (resident)
            pl.BlockSpec((1, HIDDEN_DIM), const),                     # b1
            pl.BlockSpec((1, HIDDEN_DIM), const),                     # gamma1
            pl.BlockSpec((1, HIDDEN_DIM), const),                     # beta1
            pl.BlockSpec((HIDDEN_DIM, OUTPUT_DIM), const),            # w2 (bf16, resident)
            pl.BlockSpec((1, OUTPUT_DIM), const),                     # b2
            pl.BlockSpec((1, OUTPUT_DIM), const),                     # gamma2
            pl.BlockSpec((1, OUTPUT_DIM), const),                     # beta2
        ],
        out_specs=pl.BlockSpec((tile_b, OUTPUT_DIM), lambda i: (i, 0)),
    )
    out = pl.pallas_call(
        _mlp_ln_kernel,
        out_shape=jax.ShapeDtypeStruct((Bp, OUTPUT_DIM), out_dtype),
        grid_spec=grid_spec,
        compiler_params=pltpu.CompilerParams(
            dimension_semantics=("parallel",),
            vmem_limit_bytes=VMEM_LIMIT_BYTES),
    )(text_features,
      params["w1"], params["b1"], params["g1"], params["be1"],
      params["w2"], params["b2"], params["g2"], params["be2"])
    # Avoid the extra slice copy when no padding was added (review item 9).
    return out if Bp == B else out[:B]


# ------------------------------ JAX glue -------------------------------------
def make_params(key):
    """Deterministic parameter init mirroring the module's __init__ shapes."""
    k1, k2, k3, k4 = jax.random.split(key, 4)
    ortho = jax.nn.initializers.orthogonal(scale=1.4)
    # torch weights are [out, in]; orthogonal_ with gain=1.4; transpose to [in, out].
    w1_t = ortho(k1, (HIDDEN_DIM, VOCAB_DIM), jnp.float32)          # [1024, 15]
    w2_t = ortho(k2, (OUTPUT_DIM, HIDDEN_DIM), jnp.float32)         # [512, 1024]
    b1 = jax.random.uniform(k3, (HIDDEN_DIM,), jnp.float32,
                            -1.0 / jnp.sqrt(VOCAB_DIM), 1.0 / jnp.sqrt(VOCAB_DIM))
    b2 = jax.random.uniform(k4, (OUTPUT_DIM,), jnp.float32,
                            -1.0 / jnp.sqrt(HIDDEN_DIM), 1.0 / jnp.sqrt(HIDDEN_DIM))
    return {
        "w1": w1_t.T,                                               # [15, 1024] f32
        "b1": b1.reshape(1, HIDDEN_DIM),
        "g1": jnp.ones((1, HIDDEN_DIM), jnp.float32),               # LayerNorm weight
        "be1": jnp.zeros((1, HIDDEN_DIM), jnp.float32),             # LayerNorm bias
        "w2": w2_t.T.astype(jnp.bfloat16),                          # [1024, 512] bf16
        "b2": b2.reshape(1, OUTPUT_DIM),
        "g2": jnp.ones((1, OUTPUT_DIM), jnp.float32),
        "be2": jnp.zeros((1, OUTPUT_DIM), jnp.float32),
    }


def make_lang_tables(key):
    """Synthetic deterministic stand-in for the CLIP-tokenized language table."""
    k_ids, k_len = jax.random.split(key)
    stored_ids = jax.random.randint(k_ids, (NUM_LANGS, MAX_LEN), 0, 49408, jnp.int32)
    lengths = jax.random.randint(k_len, (NUM_LANGS,), 5, 13, jnp.int32)     # valid lens
    pos = jnp.arange(MAX_LEN)[None, :]
    stored_mask = (pos < lengths[:, None]).astype(jnp.int32)                # [N, L]
    return stored_ids, stored_mask


def build_text_features(input_ids, attention_mask, stored_ids, stored_mask):
    """Replicates _find_matching_lang + one-hot scatter, vectorized in JAX."""
    valid_len = attention_mask.sum(axis=-1)                                 # [B]
    stored_len = stored_mask.sum(axis=-1)                                   # [N]
    pos = jnp.arange(MAX_LEN)
    # equal at every valid position (positions beyond valid_len don't matter)
    eq = (input_ids[:, None, :] == stored_ids[None, :, :]) | \
         (pos[None, None, :] >= valid_len[:, None, None])                   # [B, N, L]
    match = jnp.all(eq, axis=-1) & (valid_len[:, None] == stored_len[None, :])
    onehot = jnp.zeros((input_ids.shape[0], VOCAB_DIM), jnp.float32)
    onehot = onehot.at[:, :NUM_LANGS].set(match.astype(jnp.float32))
    return onehot


def one_hot_backbone_forward(tokenized_inputs, params, stored_ids, stored_mask,
                             out_dtype=jnp.float32):
    input_ids = tokenized_inputs["input_ids"]
    attention_mask = tokenized_inputs["attention_mask"]
    if input_ids.ndim == 3:
        max_len = input_ids.shape[-1]
        input_ids = input_ids.reshape(-1, max_len)
        attention_mask = attention_mask.reshape(-1, max_len)
    text_features = build_text_features(input_ids, attention_mask,
                                        stored_ids, stored_mask)
    return {"text_features": body_forward(text_features, params, out_dtype)}


# Pure-JAX reference of the body (mirrors the kernel's bf16 second matmul path).
def _body_reference(x, p):
    h = x @ p["w1"] + p["b1"]
    mu = h.mean(-1, keepdims=True)
    var = ((h - mu) ** 2).mean(-1, keepdims=True)
    h = (h - mu) / jnp.sqrt(var + LN_EPS) * p["g1"] + p["be1"]
    h = jnp.maximum(h, 0.0)
    w2 = p["w2"].astype(jnp.float32)
    y = h.astype(jnp.bfloat16).astype(jnp.float32) @ w2 + p["b2"]
    mu2 = y.mean(-1, keepdims=True)
    var2 = ((y - mu2) ** 2).mean(-1, keepdims=True)
    return (y - mu2) / jnp.sqrt(var2 + LN_EPS) * p["g2"] + p["be2"]


if __name__ == "__main__":
    key = jax.random.PRNGKey(0)
    k_params, k_langs, k_sel = jax.random.split(key, 3)

    params = make_params(k_params)
    stored_ids, stored_mask = make_lang_tables(k_langs)

    # ---- Case 1: batch of 2 utterances in the 3-D [B, 1, max_len] form -------
    sel = jnp.array([3, 7], dtype=jnp.int32)
    input_ids = stored_ids[sel][:, None, :]                 # [2, 1, 25]
    attention_mask = stored_mask[sel][:, None, :]           # [2, 1, 25]
    tokenized_inputs = {"input_ids": input_ids, "attention_mask": attention_mask}

    out = one_hot_backbone_forward(tokenized_inputs, params, stored_ids, stored_mask)
    result = jax.block_until_ready(out["text_features"])    # [2, 512] f32

    tf = build_text_features(input_ids.reshape(-1, MAX_LEN),
                             attention_mask.reshape(-1, MAX_LEN),
                             stored_ids, stored_mask)
    ref = _body_reference(tf, params)
    assert result.shape == (2, OUTPUT_DIM)
    assert result.dtype == jnp.float32
    assert bool(jnp.allclose(result, ref, atol=5e-3, rtol=5e-3))

    # ---- Case 2: larger 2-D batch exercising the multi-tile (>=2) grid path --
    sel20 = jax.random.randint(k_sel, (20,), 0, NUM_LANGS, jnp.int32)
    ids20 = stored_ids[sel20]                                # [20, 25]
    mask20 = stored_mask[sel20]                              # [20, 25]
    out20 = one_hot_backbone_forward(
        {"input_ids": ids20, "attention_mask": mask20},
        params, stored_ids, stored_mask)
    res20 = jax.block_until_ready(out20["text_features"])
    tf20 = build_text_features(ids20, mask20, stored_ids, stored_mask)
    ref20 = _body_reference(tf20, params)
    assert res20.shape == (20, OUTPUT_DIM)
    assert bool(jnp.allclose(res20, ref20, atol=5e-3, rtol=5e-3))

    # ---- Case 3: optional bf16 output path (halves the dominant HBM writeback)
    out_bf16 = one_hot_backbone_forward(
        tokenized_inputs, params, stored_ids, stored_mask, out_dtype=jnp.bfloat16)
    res_bf16 = jax.block_until_ready(out_bf16["text_features"])
    assert res_bf16.dtype == jnp.bfloat16
    assert bool(jnp.allclose(res_bf16.astype(jnp.float32), ref, atol=5e-2, rtol=5e-2))

    print("KERNEL_OK")
</pallas_src>

<mosaic_0001>
module attributes {stable_mosaic.version = 11 : i64} {
  func.func @_mlp_ln_kernel(%arg0: i32, %arg1: memref<8x15xf32, #tpu.memory_space<vmem>>, %arg2: memref<15x1024xf32, #tpu.memory_space<vmem>>, %arg3: memref<1x1024xf32, #tpu.memory_space<vmem>>, %arg4: memref<1x1024xf32, #tpu.memory_space<vmem>>, %arg5: memref<1x1024xf32, #tpu.memory_space<vmem>>, %arg6: memref<1024x512xbf16, #tpu.memory_space<vmem>>, %arg7: memref<1x512xf32, #tpu.memory_space<vmem>>, %arg8: memref<1x512xf32, #tpu.memory_space<vmem>>, %arg9: memref<1x512xf32, #tpu.memory_space<vmem>>, %arg10: memref<8x512xf32, #tpu.memory_space<vmem>>) attributes {dimension_semantics = [#tpu.dimension_semantics<parallel>], iteration_bounds = array<i64: 1>, scalar_prefetch = 0 : i64, scratch_operands = 0 : i64, tpu.core_type = #tpu.core_type<tc>, window_params = [{transform_indices = @transform_0, window_bounds = array<i64: 8, 15>}, {pipeline_mode = #tpu.pipeline_mode<synchronous>, transform_indices = @transform_1, window_bounds = array<i64: 15, 1024>}, {pipeline_mode = #tpu.pipeline_mode<synchronous>, transform_indices = @transform_2, window_bounds = array<i64: 1, 1024>}, {pipeline_mode = #tpu.pipeline_mode<synchronous>, transform_indices = @transform_3, window_bounds = array<i64: 1, 1024>}, {pipeline_mode = #tpu.pipeline_mode<synchronous>, transform_indices = @transform_4, window_bounds = array<i64: 1, 1024>}, {pipeline_mode = #tpu.pipeline_mode<synchronous>, transform_indices = @transform_5, window_bounds = array<i64: 1024, 512>}, {pipeline_mode = #tpu.pipeline_mode<synchronous>, transform_indices = @transform_6, window_bounds = array<i64: 1, 512>}, {pipeline_mode = #tpu.pipeline_mode<synchronous>, transform_indices = @transform_7, window_bounds = array<i64: 1, 512>}, {pipeline_mode = #tpu.pipeline_mode<synchronous>, transform_indices = @transform_8, window_bounds = array<i64: 1, 512>}, {transform_indices = @transform_9, window_bounds = array<i64: 8, 512>}]} {
    %c0 = arith.constant 0 : index
    %c0_0 = arith.constant 0 : index
    %0 = vector.load %arg1[%c0, %c0_0] : memref<8x15xf32, #tpu.memory_space<vmem>>, vector<8x15xf32>
    %c0_1 = arith.constant 0 : index
    %c0_2 = arith.constant 0 : index
    %1 = vector.load %arg2[%c0_1, %c0_2] : memref<15x1024xf32, #tpu.memory_space<vmem>>, vector<15x1024xf32>
    %cst = arith.constant dense<0.000000e+00> : vector<8x1024xf32>
    %2 = tpu.matmul %0, %1, %cst {dimension_numbers = #tpu.dot_dimension_numbers<[1], [0], [0], [1], [0, 0, 1, 1], [], []>} : vector<8x15xf32>, vector<15x1024xf32>, vector<8x1024xf32> -> vector<8x1024xf32>
    %c0_3 = arith.constant 0 : index
    %c0_4 = arith.constant 0 : index
    %3 = vector.load %arg3[%c0_3, %c0_4] : memref<1x1024xf32, #tpu.memory_space<vmem>>, vector<1x1024xf32>
    %4 = vector.broadcast %3 : vector<1x1024xf32> to vector<8x1024xf32>
    %5 = arith.addf %2, %4 : vector<8x1024xf32>
    %cst_5 = arith.constant dense<0.000000e+00> : vector<8xf32>
    %6 = vector.multi_reduction <add>, %5, %cst_5 [1] : vector<8x1024xf32> to vector<8xf32>
    %7 = vector.shape_cast %6 : vector<8xf32> to vector<8x1xf32>
    %cst_6 = arith.constant 1.024000e+03 : f32
    %8 = vector.broadcast %cst_6 : f32 to vector<8x1xf32>
    %9 = arith.divf %7, %8 : vector<8x1xf32>
    %10 = arith.mulf %5, %5 : vector<8x1024xf32>
    %cst_7 = arith.constant dense<0.000000e+00> : vector<8xf32>
    %11 = vector.multi_reduction <add>, %10, %cst_7 [1] : vector<8x1024xf32> to vector<8xf32>
    %12 = vector.shape_cast %11 : vector<8xf32> to vector<8x1xf32>
    %cst_8 = arith.constant 1.024000e+03 : f32
    %13 = vector.broadcast %cst_8 : f32 to vector<8x1xf32>
    %14 = arith.divf %12, %13 : vector<8x1xf32>
    %15 = arith.mulf %9, %9 : vector<8x1xf32>
    %16 = arith.subf %14, %15 : vector<8x1xf32>
    %cst_9 = arith.constant 0.000000e+00 : f32
    %17 = vector.broadcast %cst_9 : f32 to vector<8x1xf32>
    %18 = arith.maximumf %16, %17 : vector<8x1xf32>
    %19 = vector.broadcast %9 : vector<8x1xf32> to vector<8x1024xf32>
    %20 = arith.subf %5, %19 : vector<8x1024xf32>
    %cst_10 = arith.constant 9.99999974E-6 : f32
    %21 = vector.broadcast %cst_10 : f32 to vector<8x1xf32>
    %22 = arith.addf %18, %21 : vector<8x1xf32>
    %23 = math.rsqrt %22 : vector<8x1xf32>
    %24 = vector.broadcast %23 : vector<8x1xf32> to vector<8x1024xf32>
    %25 = arith.mulf %20, %24 : vector<8x1024xf32>
    %c0_11 = arith.constant 0 : index
    %c0_12 = arith.constant 0 : index
    %26 = vector.load %arg4[%c0_11, %c0_12] : memref<1x1024xf32, #tpu.memory_space<vmem>>, vector<1x1024xf32>
    %27 = vector.broadcast %26 : vector<1x1024xf32> to vector<8x1024xf32>
    %28 = arith.mulf %25, %27 : vector<8x1024xf32>
    %c0_13 = arith.constant 0 : index
    %c0_14 = arith.constant 0 : index
    %29 = vector.load %arg5[%c0_13, %c0_14] : memref<1x1024xf32, #tpu.memory_space<vmem>>, vector<1x1024xf32>
    %30 = vector.broadcast %29 : vector<1x1024xf32> to vector<8x1024xf32>
    %31 = arith.addf %28, %30 : vector<8x1024xf32>
    %cst_15 = arith.constant 0.000000e+00 : f32
    %32 = vector.broadcast %cst_15 : f32 to vector<8x1024xf32>
    %33 = arith.maximumf %31, %32 : vector<8x1024xf32>
    %34 = arith.truncf %33 : vector<8x1024xf32> to vector<8x1024xbf16>
    %c0_16 = arith.constant 0 : index
    %c0_17 = arith.constant 0 : index
    %35 = vector.load %arg6[%c0_16, %c0_17] : memref<1024x512xbf16, #tpu.memory_space<vmem>>, vector<1024x512xbf16>
    %cst_18 = arith.constant dense<0.000000e+00> : vector<8x512xf32>
    %36 = tpu.matmul %34, %35, %cst_18 {dimension_numbers = #tpu.dot_dimension_numbers<[1], [0], [0], [1], [0, 0, 1, 1], [], []>} : vector<8x1024xbf16>, vector<1024x512xbf16>, vector<8x512xf32> -> vector<8x512xf32>
    %c0_19 = arith.constant 0 : index
    %c0_20 = arith.constant 0 : index
    %37 = vector.load %arg7[%c0_19, %c0_20] : memref<1x512xf32, #tpu.memory_space<vmem>>, vector<1x512xf32>
    %38 = vector.broadcast %37 : vector<1x512xf32> to vector<8x512xf32>
    %39 = arith.addf %36, %38 : vector<8x512xf32>
    %cst_21 = arith.constant dense<0.000000e+00> : vector<8xf32>
    %40 = vector.multi_reduction <add>, %39, %cst_21 [1] : vector<8x512xf32> to vector<8xf32>
    %41 = vector.shape_cast %40 : vector<8xf32> to vector<8x1xf32>
    %cst_22 = arith.constant 5.120000e+02 : f32
    %42 = vector.broadcast %cst_22 : f32 to vector<8x1xf32>
    %43 = arith.divf %41, %42 : vector<8x1xf32>
    %44 = arith.mulf %39, %39 : vector<8x512xf32>
    %cst_23 = arith.constant dense<0.000000e+00> : vector<8xf32>
    %45 = vector.multi_reduction <add>, %44, %cst_23 [1] : vector<8x512xf32> to vector<8xf32>
    %46 = vector.shape_cast %45 : vector<8xf32> to vector<8x1xf32>
    %cst_24 = arith.constant 5.120000e+02 : f32
    %47 = vector.broadcast %cst_24 : f32 to vector<8x1xf32>
    %48 = arith.divf %46, %47 : vector<8x1xf32>
    %49 = arith.mulf %43, %43 : vector<8x1xf32>
    %50 = arith.subf %48, %49 : vector<8x1xf32>
    %cst_25 = arith.constant 0.000000e+00 : f32
    %51 = vector.broadcast %cst_25 : f32 to vector<8x1xf32>
    %52 = arith.maximumf %50, %51 : vector<8x1xf32>
    %53 = vector.broadcast %43 : vector<8x1xf32> to vector<8x512xf32>
    %54 = arith.subf %39, %53 : vector<8x512xf32>
    %cst_26 = arith.constant 9.99999974E-6 : f32
    %55 = vector.broadcast %cst_26 : f32 to vector<8x1xf32>
    %56 = arith.addf %52, %55 : vector<8x1xf32>
    %57 = math.rsqrt %56 : vector<8x1xf32>
    %58 = vector.broadcast %57 : vector<8x1xf32> to vector<8x512xf32>
    %59 = arith.mulf %54, %58 : vector<8x512xf32>
    %c0_27 = arith.constant 0 : index
    %c0_28 = arith.constant 0 : index
    %60 = vector.load %arg8[%c0_27, %c0_28] : memref<1x512xf32, #tpu.memory_space<vmem>>, vector<1x512xf32>
    %61 = vector.broadcast %60 : vector<1x512xf32> to vector<8x512xf32>
    %62 = arith.mulf %59, %61 : vector<8x512xf32>
    %c0_29 = arith.constant 0 : index
    %c0_30 = arith.constant 0 : index
    %63 = vector.load %arg9[%c0_29, %c0_30] : memref<1x512xf32, #tpu.memory_space<vmem>>, vector<1x512xf32>
    %64 = vector.broadcast %63 : vector<1x512xf32> to vector<8x512xf32>
    %65 = arith.addf %62, %64 : vector<8x512xf32>
    %c0_31 = arith.constant 0 : index
    %c0_32 = arith.constant 0 : index
    %66 = vector.load %arg10[%c0_31, %c0_32] : memref<8x512xf32, #tpu.memory_space<vmem>>, vector<8x512xf32>
    tpu.vector_store %arg10[%c0_31, %c0_32], %65 {strides = array<i32>} : memref<8x512xf32, #tpu.memory_space<vmem>>, vector<8x512xf32>,
    return
  }
  func.func @transform_0(%arg0: i32) -> (i32, i32) {
    %c0_i32 = arith.constant 0 : i32
    %c0_i32_0 = arith.constant 0 : i32
    return %arg0, %c0_i32 : i32, i32
  }
  func.func @transform_1(%arg0: i32) -> (i32, i32) {
    %c0_i32 = arith.constant 0 : i32
    %c0_i32_0 = arith.constant 0 : i32
    %c0_i32_1 = arith.constant 0 : i32
    return %c0_i32, %c0_i32_0 : i32, i32
  }
  func.func @transform_2(%arg0: i32) -> (i32, i32) {
    %c0_i32 = arith.constant 0 : i32
    %c0_i32_0 = arith.constant 0 : i32
    %c0_i32_1 = arith.constant 0 : i32
    return %c0_i32, %c0_i32_0 : i32, i32
  }
  func.func @transform_3(%arg0: i32) -> (i32, i32) {
    %c0_i32 = arith.constant 0 : i32
    %c0_i32_0 = arith.constant 0 : i32
    %c0_i32_1 = arith.constant 0 : i32
    return %c0_i32, %c0_i32_0 : i32, i32
  }
  func.func @transform_4(%arg0: i32) -> (i32, i32) {
    %c0_i32 = arith.constant 0 : i32
    %c0_i32_0 = arith.constant 0 : i32
    %c0_i32_1 = arith.constant 0 : i32
    return %c0_i32, %c0_i32_0 : i32, i32
  }
  func.func @transform_5(%arg0: i32) -> (i32, i32) {
    %c0_i32 = arith.constant 0 : i32
    %c0_i32_0 = arith.constant 0 : i32
    %c0_i32_1 = arith.constant 0 : i32
    return %c0_i32, %c0_i32_0 : i32, i32
  }
  func.func @transform_6(%arg0: i32) -> (i32, i32) {
    %c0_i32 = arith.constant 0 : i32
    %c0_i32_0 = arith.constant 0 : i32
    %c0_i32_1 = arith.constant 0 : i32
    return %c0_i32, %c0_i32_0 : i32, i32
  }
  func.func @transform_7(%arg0: i32) -> (i32, i32) {
    %c0_i32 = arith.constant 0 : i32
    %c0_i32_0 = arith.constant 0 : i32
    %c0_i32_1 = arith.constant 0 : i32
    return %c0_i32, %c0_i32_0 : i32, i32
  }
  func.func @transform_8(%arg0: i32) -> (i32, i32) {
    %c0_i32 = arith.constant 0 : i32
    %c0_i32_0 = arith.constant 0 : i32
    %c0_i32_1 = arith.constant 0 : i32
    return %c0_i32, %c0_i32_0 : i32, i32
  }
  func.func @transform_9(%arg0: i32) -> (i32, i32) {
    %c0_i32 = arith.constant 0 : i32
    %c0_i32_0 = arith.constant 0 : i32
    return %arg0, %c0_i32 : i32, i32
  }
}

</mosaic_0001>

<llo_original>
// kernel: tpu_custom_call.1
$region0: #{tpu_custom_call.1}
  #allocation0 [shape = 'u32[]', space=smem, size = 0x4, offset = 0x4, fixed_abs, tag = 'smem constant byte address 0x4 - core index']
  #allocation1 [shape = 'u32[72,128]{1,0:T(1,128)}', space=vmem, size = 0x9000, scoped, tag = 'internal scratch']
  %s0 = inlined_call_operand.hbm [shape: f32[8,15], index: 0, kind: input, shape index: {}]
  %s1 = inlined_call_operand.hbm [shape: f32[15,1024], index: 1, kind: input, shape index: {}]
  %s2 = inlined_call_operand.hbm [shape: f32[1,1024], index: 2, kind: input, shape index: {}]
  %s3 = inlined_call_operand.hbm [shape: f32[1,1024], index: 3, kind: input, shape index: {}]
  %s4 = inlined_call_operand.hbm [shape: f32[1,1024], index: 4, kind: input, shape index: {}]
  %s5 = inlined_call_operand.hbm [shape: bf16[1024,512], index: 5, kind: input, shape index: {}]
  %s6 = inlined_call_operand.vmem [shape: f32[1,512], index: 6, kind: input, shape index: {}]
  %s7 = inlined_call_operand.hbm [shape: f32[1,512], index: 7, kind: input, shape index: {}]
  %s8 = inlined_call_operand.hbm [shape: f32[1,512], index: 8, kind: input, shape index: {}]
  %s9 = inlined_call_operand.hbm [shape: f32[8,512], index: 9, kind: output, shape index: {}]
  %s10 = sld [smem:[#allocation0]]
  $region78: #{tpu_custom_call.1} parent=0
    _
  %s12 = ssub.s32 1, %s10
  %s13 = scalar_select 0, %s12, %s10
  $region1: #{tpu_custom_call.1} parent=0
    #allocation2 [shape = 'u8[4096]{0}', space=vmem, size = 0x1000, scoped, tag = 'input window, operand 0, single buffered']
    #allocation3 [shape = 's32[1]{0}', space=sflag, size = 0x4, scoped, tag = 'scoped memory for tpu_custom_call.1']
    #allocation4 [shape = 's32[1]{0}', space=sflag, size = 0x4, scoped, tag = 'scoped memory for tpu_custom_call.1']
    #allocation5 [shape = 'u8[65536]{0}', space=vmem, size = 0x10000, scoped, tag = 'input window, operand 1, single buffered']
    #allocation6 [shape = 's32[1]{0}', space=sflag, size = 0x4, scoped, tag = 'scoped memory for tpu_custom_call.1']
    #allocation7 [shape = 'u8[4096]{0}', space=vmem, size = 0x1000, scoped, tag = 'input window, operand 2, single buffered']
    #allocation8 [shape = 'u8[4096]{0}', space=vmem, size = 0x1000, scoped, tag = 'input window, operand 3, single buffered']
    #allocation9 [shape = 's32[1]{0}', space=sflag, size = 0x4, scoped, tag = 'scoped memory for tpu_custom_call.1']
    #allocation10 [shape = 'u8[4096]{0}', space=vmem, size = 0x1000, scoped, tag = 'input window, operand 4, single buffered']
    #allocation11 [shape = 'u8[1048576]{0}', space=vmem, size = 0x100000, scoped, tag = 'input window, operand 5, single buffered']
    #allocation12 [shape = 's32[1]{0}', space=sflag, size = 0x4, scoped, tag = 'scoped memory for tpu_custom_call.1']
    #allocation13 [shape = 'u8[2048]{0}', space=vmem, size = 0x800, scoped, tag = 'input window, operand 7, single buffered']
    #allocation14 [shape = 'u8[2048]{0}', space=vmem, size = 0x800, scoped, tag = 'input window, operand 8, single buffered']
    #allocation15 [shape = 's32[1]{0}', space=sflag, size = 0x4, scoped, tag = 'scoped memory for tpu_custom_call.1']
    #allocation16 [shape = 'u8[16384]{0}', space=vmem, size = 0x4000, scoped, tag = 'output window, operand 0, single buffered']
    %14 = vsyncpa [#allocation3], 0
    %15 = vsyncpa [#allocation6], 0
    %16 = vsyncpa [#allocation9], 0
    %17 = vsyncpa [#allocation12], 0
    %18 = vsyncpa [#allocation15], 0
    %19 = vsyncpa [#allocation4], 0
    // Predicated region
    $region2: #{tpu_custom_call.1} parent=1 // pred_check
      _
    $region3: #{tpu_custom_call.1} parent=1 // pred_check_branch
      %21 = sbr.rel (0) target = $region5
    $region4: #{tpu_custom_call.1} parent=1 // pred_region
      %23 = vsyncadd [#allocation3], 0
      %s25 = sshll.u32 %s0, 4
      %s26 = int_to_ptr.hbm [resolvable:$true] %s25
      %s27 = sshll.u32 [#allocation2], 4
      %s28 = int_to_ptr.vmem [resolvable:$true] %s27
      %30 = dma.hbm_to_vmem [thread:$0]  %s26, 128, %s28, [#allocation3]
    $region5: #{tpu_custom_call.1} parent=1 // pred_fallthru
      _
    // Predicated region
    $region6: #{tpu_custom_call.1} parent=1 // pred_check
      _
    $region7: #{tpu_custom_call.1} parent=1 // pred_check_branch
      %32 = sbr.rel (0) target = $region9
    $region8: #{tpu_custom_call.1} parent=1 // pred_region
      %34 = vsyncadd [#allocation6], 0
      %s35 = sshll.u32 %s1, 4
      %s36 = int_to_ptr.hbm [resolvable:$true] %s35
      %s37 = sshll.u32 [#allocation5], 4
      %s38 = int_to_ptr.vmem [resolvable:$true] %s37
      %43 = dma.hbm_to_vmem [thread:$0]  %s36, 2048, %s38, [#allocation6], 1024, 1024, 64
    $region9: #{tpu_custom_call.1} parent=1 // pred_fallthru
      _
    // Predicated region
    $region10: #{tpu_custom_call.1} parent=1 // pred_check
      _
    $region11: #{tpu_custom_call.1} parent=1 // pred_check_branch
      %45 = sbr.rel (0) target = $region13
    $region12: #{tpu_custom_call.1} parent=1 // pred_region
      %47 = vsyncadd [#allocation6], 0
      %s49 = sshll.u32 %s2, 4
      %s50 = int_to_ptr.hbm [resolvable:$true] %s49
      %s51 = sshll.u32 [#allocation7], 4
      %s52 = int_to_ptr.vmem [resolvable:$true] %s51
      %54 = dma.hbm_to_vmem [thread:$0]  %s50, 128, %s52, [#allocation6]
    $region13: #{tpu_custom_call.1} parent=1 // pred_fallthru
      _
    // Predicated region
    $region14: #{tpu_custom_call.1} parent=1 // pred_check
      _
    $region15: #{tpu_custom_call.1} parent=1 // pred_check_branch
      %56 = sbr.rel (0) target = $region17
    $region16: #{tpu_custom_call.1} parent=1 // pred_region
      %58 = vsyncadd [#allocation9], 0
      %s60 = sshll.u32 %s3, 4
      %s61 = int_to_ptr.hbm [resolvable:$true] %s60
      %s62 = sshll.u32 [#allocation8], 4
      %s63 = int_to_ptr.vmem [resolvable:$true] %s62
      %65 = dma.hbm_to_vmem [thread:$0]  %s61, 128, %s63, [#allocation9]
    $region17: #{tpu_custom_call.1} parent=1 // pred_fallthru
      _
    // Predicated region
    $region18: #{tpu_custom_call.1} parent=1 // pred_check
      _
    $region19: #{tpu_custom_call.1} parent=1 // pred_check_branch
      %67 = sbr.rel (0) target = $region21
    $region20: #{tpu_custom_call.1} parent=1 // pred_region
      %69 = vsyncadd [#allocation9], 0
      %s71 = sshll.u32 %s4, 4
      %s72 = int_to_ptr.hbm [resolvable:$true] %s71
      %s73 = sshll.u32 [#allocation10], 4
      %s74 = int_to_ptr.vmem [resolvable:$true] %s73
      %76 = dma.hbm_to_vmem [thread:$0]  %s72, 128, %s74, [#allocation9]
    $region21: #{tpu_custom_call.1} parent=1 // pred_fallthru
      _
    // Predicated region
    $region22: #{tpu_custom_call.1} parent=1 // pred_check
      _
    $region23: #{tpu_custom_call.1} parent=1 // pred_check_branch
      %78 = sbr.rel (0) target = $region25
    $region24: #{tpu_custom_call.1} parent=1 // pred_region
      %80 = vsyncadd [#allocation12], 0
      %s81 = sshll.u32 %s5, 4
      %s82 = int_to_ptr.hbm [resolvable:$true] %s81
      %s83 = sshll.u32 [#allocation11], 4
      %s84 = int_to_ptr.vmem [resolvable:$true] %s83
      %89 = dma.hbm_to_vmem [thread:$0]  %s82, 32768, %s84, [#allocation12], 256, 256, 16
    $region25: #{tpu_custom_call.1} parent=1 // pred_fallthru
      _
    // Predicated region
    $region26: #{tpu_custom_call.1} parent=1 // pred_check
      _
    $region27: #{tpu_custom_call.1} parent=1 // pred_check_branch
      %91 = sbr.rel (0) target = $region29
    $region28: #{tpu_custom_call.1} parent=1 // pred_region
      _
    $region29: #{tpu_custom_call.1} parent=1 // pred_fallthru
      _
    // Predicated region
    $region30: #{tpu_custom_call.1} parent=1 // pred_check
      _
    $region31: #{tpu_custom_call.1} parent=1 // pred_check_branch
      %93 = sbr.rel (0) target = $region33
    $region32: #{tpu_custom_call.1} parent=1 // pred_region
      %95 = vsyncadd [#allocation12], 0
      %s97 = sshll.u32 %s7, 4
      %s98 = int_to_ptr.hbm [resolvable:$true] %s97
      %s99 = sshll.u32 [#allocation13], 4
      %s100 = int_to_ptr.vmem [resolvable:$true] %s99
      %102 = dma.hbm_to_vmem [thread:$0]  %s98, 64, %s100, [#allocation12]
    $region33: #{tpu_custom_call.1} parent=1 // pred_fallthru
      _
    // Predicated region
    $region34: #{tpu_custom_call.1} parent=1 // pred_check
      _
    $region35: #{tpu_custom_call.1} parent=1 // pred_check_branch
      %104 = sbr.rel (0) target = $region37
    $region36: #{tpu_custom_call.1} parent=1 // pred_region
      %106 = vsyncadd [#allocation15], 0
      %s108 = sshll.u32 %s8, 4
      %s109 = int_to_ptr.hbm [resolvable:$true] %s108
      %s110 = sshll.u32 [#allocation14], 4
      %s111 = int_to_ptr.vmem [resolvable:$true] %s110
      %113 = dma.hbm_to_vmem [thread:$0]  %s109, 64, %s111, [#allocation15]
    $region37: #{tpu_custom_call.1} parent=1 // pred_fallthru
      _
    // Predicated region
    $region38: #{tpu_custom_call.1} parent=1 // pred_check
      _
    $region39: #{tpu_custom_call.1} parent=1 // pred_check_branch
      %115 = sbr.rel (0) target = $region41
    $region40: #{tpu_custom_call.1} parent=1 // pred_region
      %117 = dma.done [#allocation3], 128
    $region41: #{tpu_custom_call.1} parent=1 // pred_fallthru
      _
    // Predicated region
    $region42: #{tpu_custom_call.1} parent=1 // pred_check
      _
    $region43: #{tpu_custom_call.1} parent=1 // pred_check_branch
      %119 = sbr.rel (0) target = $region45
    $region44: #{tpu_custom_call.1} parent=1 // pred_region
      %121 = dma.done [#allocation6], 2048
    $region45: #{tpu_custom_call.1} parent=1 // pred_fallthru
      _
    // Predicated region
    $region46: #{tpu_custom_call.1} parent=1 // pred_check
      _
    $region47: #{tpu_custom_call.1} parent=1 // pred_check_branch
      %123 = sbr.rel (0) target = $region49
    $region48: #{tpu_custom_call.1} parent=1 // pred_region
      %125 = dma.done [#allocation6], 128
    $region49: #{tpu_custom_call.1} parent=1 // pred_fallthru
      _
    // Predicated region
    $region50: #{tpu_custom_call.1} parent=1 // pred_check
      _
    $region51: #{tpu_custom_call.1} parent=1 // pred_check_branch
      %127 = sbr.rel (0) target = $region53
    $region52: #{tpu_custom_call.1} parent=1 // pred_region
      %129 = dma.done [#allocation9], 128
    $region53: #{tpu_custom_call.1} parent=1 // pred_fallthru
      _
    // Predicated region
    $region54: #{tpu_custom_call.1} parent=1 // pred_check
      _
    $region55: #{tpu_custom_call.1} parent=1 // pred_check_branch
      %131 = sbr.rel (0) target = $region57
    $region56: #{tpu_custom_call.1} parent=1 // pred_region
      %133 = dma.done [#allocation9], 128
    $region57: #{tpu_custom_call.1} parent=1 // pred_fallthru
      _
    // Predicated region
    $region58: #{tpu_custom_call.1} parent=1 // pred_check
      _
    $region59: #{tpu_custom_call.1} parent=1 // pred_check_branch
      %135 = sbr.rel (0) target = $region61
    $region60: #{tpu_custom_call.1} parent=1 // pred_region
      %137 = dma.done [#allocation12], 32768
    $region61: #{tpu_custom_call.1} parent=1 // pred_fallthru
      _
    // Predicated region
    $region62: #{tpu_custom_call.1} parent=1 // pred_check
      _
    $region63: #{tpu_custom_call.1} parent=1 // pred_check_branch
      %139 = sbr.rel (0) target = $region65
    $region64: #{tpu_custom_call.1} parent=1 // pred_region
      %141 = dma.done [#allocation12], 64
    $region65: #{tpu_custom_call.1} parent=1 // pred_fallthru
      _
    // Predicated region
    $region66: #{tpu_custom_call.1} parent=1 // pred_check
      _
    $region67: #{tpu_custom_call.1} parent=1 // pred_check_branch
      %143 = sbr.rel (0) target = $region69
    $region68: #{tpu_custom_call.1} parent=1 // pred_region
      %145 = dma.done [#allocation15], 64
    $region69: #{tpu_custom_call.1} parent=1 // pred_fallthru
      _
    %v146 = vld [vmem:[#allocation2] sm:$0xff]
    %v147 = vld [vmem:[#allocation5] sm:$0xff]
    %v148 = vld [vmem:[#allocation5 + $0x8] sm:$0xff]
    %v149 = vld [vmem:[#allocation5 + $0x10] sm:$0xff]
    %v150 = vld [vmem:[#allocation5 + $0x18] sm:$0xff]
    %v151 = vld [vmem:[#allocation5 + $0x20] sm:$0xff]
    %v152 = vld [vmem:[#allocation5 + $0x28] sm:$0xff]
    %v153 = vld [vmem:[#allocation5 + $0x30] sm:$0xff]
    %v154 = vld [vmem:[#allocation5 + $0x38] sm:$0xff]
    %v155 = vld [vmem:[#allocation5 + $0x40] sm:$0x7f]
    %v156 = vld [vmem:[#allocation5 + $0x48] sm:$0x7f]
    %v157 = vld [vmem:[#allocation5 + $0x50] sm:$0x7f]
    %v158 = vld [vmem:[#allocation5 + $0x58] sm:$0x7f]
    %v159 = vld [vmem:[#allocation5 + $0x60] sm:$0x7f]
    %v160 = vld [vmem:[#allocation5 + $0x68] sm:$0x7f]
    %v161 = vld [vmem:[#allocation5 + $0x70] sm:$0x7f]
    %v162 = vld [vmem:[#allocation5 + $0x78] sm:$0x7f]
    %v163 = vld [vmem:[#allocation7] sm:$0xff]
    %v165 = vperm.slane %v163, 0
    %v166 = vperm.slane %v163, 1
    %v167 = vperm.slane %v163, 2
    %v168 = vperm.slane %v163, 3
    %v169 = vperm.slane %v163, 4
    %v170 = vperm.slane %v163, 5
    %v171 = vperm.slane %v163, 6
    %v172 = vperm.slane %v163, 7
    %vm181 = vcmask 121856
    %v183 = vsel %vm181, %v146, 0
    %vm185 = vcmask 1046528
    %v187 = vsel %vm185, %v155, 0
    %v190 = vsel %vm185, %v156, 0
    %v193 = vsel %vm185, %v157, 0
    %v196 = vsel %vm185, %v158, 0
    %v199 = vsel %vm185, %v159, 0
    %v202 = vsel %vm185, %v160, 0
    %v205 = vsel %vm185, %v161, 0
    %v208 = vsel %vm185, %v162, 0
    %210 = vmatpush.msra.mxu0 0.0
    %211 = vmatpush.msra.mxu0 0.0
    %212 = vmatpush.msra.mxu0 0.0
    %213 = vmatpush.msra.mxu0 0.0
    %214 = vmatpush.msra.mxu0 0.0
    %215 = vmatpush.msra.mxu0 0.0
    %216 = vmatpush.msra.mxu0 0.0
    %217 = vmatpush.msra.mxu0 0.0
    %218 = vmatpush.msra.mxu0 0.0
    %219 = vmatpush.msra.mxu0 0.0
    %220 = vmatpush.msra.mxu0 0.0
    %221 = vmatpush.msra.mxu0 0.0
    %222 = vmatpush.msra.mxu0 0.0
    %223 = vmatpush.msra.mxu0 0.0
    %224 = vmatpush.msra.mxu0 %v187
    %225 = vmatpush.msra.mxu0 %v147
    %226 = vmatmul.f32.gmra.mxu0 %v183
    %v227 = vpop.f32.mrf.mxu0
    %v228 = vadd.f32 %v165, %v227
    %229 = vdwg.mxu0
    %230 = vmatpush.msra.mxu0 0.0
    %231 = vmatpush.msra.mxu0 0.0
    %232 = vmatpush.msra.mxu0 0.0
    %233 = vmatpush.msra.mxu0 0.0
    %234 = vmatpush.msra.mxu0 0.0
    %235 = vmatpush.msra.mxu0 0.0
    %236 = vmatpush.msra.mxu0 0.0
    %237 = vmatpush.msra.mxu0 0.0
    %238 = vmatpush.msra.mxu0 0.0
    %239 = vmatpush.msra.mxu0 0.0
    %240 = vmatpush.msra.mxu0 0.0
    %241 = vmatpush.msra.mxu0 0.0
    %242 = vmatpush.msra.mxu0 0.0
    %243 = vmatpush.msra.mxu0 0.0
    %244 = vmatpush.msra.mxu0 %v190
    %245 = vmatpush.msra.mxu0 %v148
    %246 = vmatmul.f32.gmra.mxu0 %v183
    %v247 = vpop.f32.mrf.mxu0
    %v248 = vadd.f32 %v166, %v247
    %249 = vdwg.mxu0
    %250 = vmatpush.msra.mxu0 0.0
    %251 = vmatpush.msra.mxu0 0.0
    %252 = vmatpush.msra.mxu0 0.0
    %253 = vmatpush.msra.mxu0 0.0
    %254 = vmatpush.msra.mxu0 0.0
    %255 = vmatpush.msra.mxu0 0.0
    %256 = vmatpush.msra.mxu0 0.0
    %257 = vmatpush.msra.mxu0 0.0
    %258 = vmatpush.msra.mxu0 0.0
    %259 = vmatpush.msra.mxu0 0.0
    %260 = vmatpush.msra.mxu0 0.0
    %261 = vmatpush.msra.mxu0 0.0
    %262 = vmatpush.msra.mxu0 0.0
    %263 = vmatpush.msra.mxu0 0.0
    %264 = vmatpush.msra.mxu0 %v193
    %265 = vmatpush.msra.mxu0 %v149
    %266 = vmatmul.f32.gmra.mxu0 %v183
    %v267 = vpop.f32.mrf.mxu0
    %v268 = vadd.f32 %v167, %v267
    %269 = vdwg.mxu0
    %270 = vmatpush.msra.mxu0 0.0
    %271 = vmatpush.msra.mxu0 0.0
    %272 = vmatpush.msra.mxu0 0.0
    %273 = vmatpush.msra.mxu0 0.0
    %274 = vmatpush.msra.mxu0 0.0
    %275 = vmatpush.msra.mxu0 0.0
    %276 = vmatpush.msra.mxu0 0.0
    %277 = vmatpush.msra.mxu0 0.0
    %278 = vmatpush.msra.mxu0 0.0
    %279 = vmatpush.msra.mxu0 0.0
    %280 = vmatpush.msra.mxu0 0.0
    %281 = vmatpush.msra.mxu0 0.0
    %282 = vmatpush.msra.mxu0 0.0
    %283 = vmatpush.msra.mxu0 0.0
    %284 = vmatpush.msra.mxu0 %v196
    %285 = vmatpush.msra.mxu0 %v150
    %286 = vmatmul.f32.gmra.mxu0 %v183
    %v287 = vpop.f32.mrf.mxu0
    %v288 = vadd.f32 %v168, %v287
    %289 = vdwg.mxu0
    %290 = vmatpush.msra.mxu0 0.0
    %291 = vmatpush.msra.mxu0 0.0
    %292 = vmatpush.msra.mxu0 0.0
    %293 = vmatpush.msra.mxu0 0.0
    %294 = vmatpush.msra.mxu0 0.0
    %295 = vmatpush.msra.mxu0 0.0
    %296 = vmatpush.msra.mxu0 0.0
    %297 = vmatpush.msra.mxu0 0.0
    %298 = vmatpush.msra.mxu0 0.0
    %299 = vmatpush.msra.mxu0 0.0
    %300 = vmatpush.msra.mxu0 0.0
    %301 = vmatpush.msra.mxu0 0.0
    %302 = vmatpush.msra.mxu0 0.0
    %303 = vmatpush.msra.mxu0 0.0
    %304 = vmatpush.msra.mxu0 %v199
    %305 = vmatpush.msra.mxu0 %v151
    %306 = vmatmul.f32.gmra.mxu0 %v183
    %v307 = vpop.f32.mrf.mxu0
    %v308 = vadd.f32 %v169, %v307
    %309 = vdwg.mxu0
    %310 = vmatpush.msra.mxu0 0.0
    %311 = vmatpush.msra.mxu0 0.0
    %312 = vmatpush.msra.mxu0 0.0
    %313 = vmatpush.msra.mxu0 0.0
    %314 = vmatpush.msra.mxu0 0.0
    %315 = vmatpush.msra.mxu0 0.0
    %316 = vmatpush.msra.mxu0 0.0
    %317 = vmatpush.msra.mxu0 0.0
    %318 = vmatpush.msra.mxu0 0.0
    %319 = vmatpush.msra.mxu0 0.0
    %320 = vmatpush.msra.mxu0 0.0
    %321 = vmatpush.msra.mxu0 0.0
    %322 = vmatpush.msra.mxu0 0.0
    %323 = vmatpush.msra.mxu0 0.0
    %324 = vmatpush.msra.mxu0 %v202
    %325 = vmatpush.msra.mxu0 %v152
    %326 = vmatmul.f32.gmra.mxu0 %v183
    %v327 = vpop.f32.mrf.mxu0
    %v328 = vadd.f32 %v170, %v327
    %329 = vdwg.mxu0
    %330 = vmatpush.msra.mxu0 0.0
    %331 = vmatpush.msra.mxu0 0.0
    %332 = vmatpush.msra.mxu0 0.0
    %333 = vmatpush.msra.mxu0 0.0
    %334 = vmatpush.msra.mxu0 0.0
    %335 = vmatpush.msra.mxu0 0.0
    %336 = vmatpush.msra.mxu0 0.0
    %337 = vmatpush.msra.mxu0 0.0
    %338 = vmatpush.msra.mxu0 0.0
    %339 = vmatpush.msra.mxu0 0.0
    %340 = vmatpush.msra.mxu0 0.0
    %341 = vmatpush.msra.mxu0 0.0
    %342 = vmatpush.msra.mxu0 0.0
    %343 = vmatpush.msra.mxu0 0.0
    %344 = vmatpush.msra.mxu0 %v205
    %345 = vmatpush.msra.mxu0 %v153
    %346 = vmatmul.f32.gmra.mxu0 %v183
    %v347 = vpop.f32.mrf.mxu0
    %v348 = vadd.f32 %v171, %v347
    %349 = vdwg.mxu0
    %350 = vmatpush.msra.mxu0 0.0
    %351 = vmatpush.msra.mxu0 0.0
    %352 = vmatpush.msra.mxu0 0.0
    %353 = vmatpush.msra.mxu0 0.0
    %354 = vmatpush.msra.mxu0 0.0
    %355 = vmatpush.msra.mxu0 0.0
    %356 = vmatpush.msra.mxu0 0.0
    %357 = vmatpush.msra.mxu0 0.0
    %358 = vmatpush.msra.mxu0 0.0
    %359 = vmatpush.msra.mxu0 0.0
    %360 = vmatpush.msra.mxu0 0.0
    %361 = vmatpush.msra.mxu0 0.0
    %362 = vmatpush.msra.mxu0 0.0
    %363 = vmatpush.msra.mxu0 0.0
    %364 = vmatpush.msra.mxu0 %v208
    %365 = vmatpush.msra.mxu0 %v154
    %366 = vmatmul.f32.gmra.mxu0 %v183
    %v367 = vpop.f32.mrf.mxu0
    %v368 = vadd.f32 %v172, %v367
    %369 = vdwg.mxu0
    %v370 = vadd.f32 %v228, %v248
    %v371 = vadd.f32 %v370, %v268
    %v372 = vadd.f32 %v371, %v288
    %v373 = vadd.f32 %v372, %v308
    %v374 = vadd.f32 %v373, %v328
    %v375 = vadd.f32 %v374, %v348
    %v376 = vadd.f32 %v375, %v368
    %377 = vadd.xlane.f32.xlu0 %v376
    %v378 = vpop.xlane.xlu0 %377
    %v379 = vrcp.pop 1024.0
    %v380 = vmul.f32 1024.0, %v379
    %v381 = vsub.f32 1.0, %v380
    %v382 = vmul.f32 %v379, %v381
    %v383 = vadd.f32 %v379, %v382
    %vm384 = vweird.f32 %v379
    %v385 = vsel %vm384, %v379, %v383
    %v386 = vmul.f32 %v378, %v385
    %v387 = vmul.f32 %v228, %v228
    %v388 = vmul.f32 %v248, %v248
    %v389 = vmul.f32 %v268, %v268
    %v390 = vmul.f32 %v288, %v288
    %v391 = vmul.f32 %v308, %v308
    %v392 = vmul.f32 %v328, %v328
    %v393 = vmul.f32 %v348, %v348
    %v394 = vmul.f32 %v368, %v368
    %v395 = vadd.f32 %v387, %v388
    %v396 = vadd.f32 %v395, %v389
    %v397 = vadd.f32 %v396, %v390
    %v398 = vadd.f32 %v397, %v391
    %v399 = vadd.f32 %v398, %v392
    %v400 = vadd.f32 %v399, %v393
    %v401 = vadd.f32 %v400, %v394
    %402 = vadd.xlane.f32.xlu0 %v401
    %v403 = vpop.xlane.xlu0 %402
    %v404 = vmul.f32 %v403, %v385
    %v405 = vmul.f32 %v386, %v386
    %v406 = vsub.f32 %v404, %v405
    %v407 = vmax.f32 %v406, 0.0
    %v408 = vsub.f32 %v228, %v386
    %v409 = vsub.f32 %v248, %v386
    %v410 = vsub.f32 %v268, %v386
    %v411 = vsub.f32 %v288, %v386
    %v412 = vsub.f32 %v308, %v386
    %v413 = vsub.f32 %v328, %v386
    %v414 = vsub.f32 %v348, %v386
    %v415 = vsub.f32 %v368, %v386
    %v416 = vadd.f32 %v407, 1e-05
    %v417 = vrsqrt.pop %v416
    %v418 = vmul.f32 %v417, %v416
    %v419 = vmul.f32 %v418, %v417
    %v420 = vmul.f32 0.5, %v419
    %v421 = vsub.f32 1.5, %v420
    %v422 = vmul.f32 %v417, %v421
    %vm423 = vweird.f32 %v416
    %vm424 = vweird.f32 %v417
    %vm425 = vmor %vm423, %vm424
    %v426 = vsel %vm425, %v417, %v422
    %v427 = vmul.f32 %v408, %v426
    %v428 = vmul.f32 %v409, %v426
    %v429 = vmul.f32 %v410, %v426
    %v430 = vmul.f32 %v411, %v426
    %v431 = vmul.f32 %v412, %v426
    %v432 = vmul.f32 %v413, %v426
    %v433 = vmul.f32 %v414, %v426
    %v434 = vmul.f32 %v415, %v426
    %v435 = vld [vmem:[#allocation8] sm:$0xff]
    %v437 = vperm.slane %v435, 0
    %v438 = vperm.slane %v435, 1
    %v439 = vperm.slane %v435, 2
    %v440 = vperm.slane %v435, 3
    %v441 = vperm.slane %v435, 4
    %v442 = vperm.slane %v435, 5
    %v443 = vperm.slane %v435, 6
    %v444 = vperm.slane %v435, 7
    %v453 = vmul.f32 %v427, %v437
    %v454 = vmul.f32 %v428, %v438
    %v455 = vmul.f32 %v429, %v439
    %v456 = vmul.f32 %v430, %v440
    %v457 = vmul.f32 %v431, %v441
    %v458 = vmul.f32 %v432, %v442
    %v459 = vmul.f32 %v433, %v443
    %v460 = vmul.f32 %v434, %v444
    %v461 = vld [vmem:[#allocation10] sm:$0xff]
    %v463 = vperm.slane %v461, 0
    %v464 = vperm.slane %v461, 1
    %v465 = vperm.slane %v461, 2
    %v466 = vperm.slane %v461, 3
    %v467 = vperm.slane %v461, 4
    %v468 = vperm.slane %v461, 5
    %v469 = vperm.slane %v461, 6
    %v470 = vperm.slane %v461, 7
    %v479 = vadd.f32 %v453, %v463
    %v480 = vadd.f32 %v454, %v464
    %v481 = vadd.f32 %v455, %v465
    %v482 = vadd.f32 %v456, %v466
    %v483 = vadd.f32 %v457, %v467
    %v484 = vadd.f32 %v458, %v468
    %v485 = vadd.f32 %v459, %v469
    %v486 = vadd.f32 %v460, %v470
    %v487 = vmax.f32 %v479, 0.0
    %v488 = vmax.f32 %v480, 0.0
    %v489 = vmax.f32 %v481, 0.0
    %v490 = vmax.f32 %v482, 0.0
    %v491 = vmax.f32 %v483, 0.0
    %v492 = vmax.f32 %v484, 0.0
    %v493 = vmax.f32 %v485, 0.0
    %v494 = vmax.f32 %v486, 0.0
    %v495 = vpack.c.bf16 %v487, %v487
    %v496 = vpack.c.bf16 %v488, %v488
    %v497 = vpack.c.bf16 %v489, %v489
    %v498 = vpack.c.bf16 %v490, %v490
    %v499 = vpack.c.bf16 %v491, %v491
    %v500 = vpack.c.bf16 %v492, %v492
    %v501 = vpack.c.bf16 %v493, %v493
    %v502 = vpack.c.bf16 %v494, %v494
    %v503 = vld [vmem:[#allocation11] sm:$0xff]
    %v504 = vld [vmem:[#allocation11 + $0x8] sm:$0xff]
    %v505 = vld [vmem:[#allocation11 + $0x10] sm:$0xff]
    %v506 = vld [vmem:[#allocation11 + $0x18] sm:$0xff]
    %v507 = vld [vmem:[#allocation11 + $0x20] sm:$0xff]
    %v508 = vld [vmem:[#allocation11 + $0x28] sm:$0xff]
    %v509 = vld [vmem:[#allocation11 + $0x30] sm:$0xff]
    %v510 = vld [vmem:[#allocation11 + $0x38] sm:$0xff]
    %v511 = vld [vmem:[#allocation11 + $0x40] sm:$0xff]
    %v512 = vld [vmem:[#allocation11 + $0x48] sm:$0xff]
    %v513 = vld [vmem:[#allocation11 + $0x50] sm:$0xff]
    %v514 = vld [vmem:[#allocation11 + $0x58] sm:$0xff]
    %v515 = vld [vmem:[#allocation11 + $0x60] sm:$0xff]
    %v516 = vld [vmem:[#allocation11 + $0x68] sm:$0xff]
    %v517 = vld [vmem:[#allocation11 + $0x70] sm:$0xff]
    %v518 = vld [vmem:[#allocation11 + $0x78] sm:$0xff]
    %v519 = vld [vmem:[#allocation11 + $0x80] sm:$0xff]
    %v520 = vld [vmem:[#allocation11 + $0x88] sm:$0xff]
    %v521 = vld [vmem:[#allocation11 + $0x90] sm:$0xff]
    %v522 = vld [vmem:[#allocation11 + $0x98] sm:$0xff]
    %v523 = vld [vmem:[#allocation11 + $0xa0] sm:$0xff]
    %v524 = vld [vmem:[#allocation11 + $0xa8] sm:$0xff]
    %v525 = vld [vmem:[#allocation11 + $0xb0] sm:$0xff]
    %v526 = vld [vmem:[#allocation11 + $0xb8] sm:$0xff]
    %v527 = vld [vmem:[#allocation11 + $0xc0] sm:$0xff]
    %v528 = vld [vmem:[#allocation11 + $0xc8] sm:$0xff]
    %v529 = vld [vmem:[#allocation11 + $0xd0] sm:$0xff]
    %v530 = vld [vmem:[#allocation11 + $0xd8] sm:$0xff]
    %v531 = vld [vmem:[#allocation11 + $0xe0] sm:$0xff]
    %v532 = vld [vmem:[#allocation11 + $0xe8] sm:$0xff]
    %v533 = vld [vmem:[#allocation11 + $0xf0] sm:$0xff]
    %v534 = vld [vmem:[#allocation11 + $0xf8] sm:$0xff]
    %v535 = vld [vmem:[#allocation11 + $0x100] sm:$0xff]
    %v536 = vld [vmem:[#allocation11 + $0x108] sm:$0xff]
    %v537 = vld [vmem:[#allocation11 + $0x110] sm:$0xff]
    %v538 = vld [vmem:[#allocation11 + $0x118] sm:$0xff]
    %v539 = vld [vmem:[#allocation11 + $0x120] sm:$0xff]
    %v540 = vld [vmem:[#allocation11 + $0x128] sm:$0xff]
    %v541 = vld [vmem:[#allocation11 + $0x130] sm:$0xff]
    %v542 = vld [vmem:[#allocation11 + $0x138] sm:$0xff]
    %v543 = vld [vmem:[#allocation11 + $0x140] sm:$0xff]
    %v544 = vld [vmem:[#allocation11 + $0x148] sm:$0xff]
    %v545 = vld [vmem:[#allocation11 + $0x150] sm:$0xff]
    %v546 = vld [vmem:[#allocation11 + $0x158] sm:$0xff]
    %v547 = vld [vmem:[#allocation11 + $0x160] sm:$0xff]
    %v548 = vld [vmem:[#allocation11 + $0x168] sm:$0xff]
    %v549 = vld [vmem:[#allocation11 + $0x170] sm:$0xff]
    %v550 = vld [vmem:[#allocation11 + $0x178] sm:$0xff]
    %v551 = vld [vmem:[#allocation11 + $0x180] sm:$0xff]
    %v552 = vld [vmem:[#allocation11 + $0x188] sm:$0xff]
    %v553 = vld [vmem:[#allocation11 + $0x190] sm:$0xff]
    %v554 = vld [vmem:[#allocation11 + $0x198] sm:$0xff]
    %v555 = vld [vmem:[#allocation11 + $0x1a0] sm:$0xff]
    %v556 = vld [vmem:[#allocation11 + $0x1a8] sm:$0xff]
    %v557 = vld [vmem:[#allocation11 + $0x1b0] sm:$0xff]
    %v558 = vld [vmem:[#allocation11 + $0x1b8] sm:$0xff]
    %v559 = vld [vmem:[#allocation11 + $0x1c0] sm:$0xff]
    %v560 = vld [vmem:[#allocation11 + $0x1c8] sm:$0xff]
    %v561 = vld [vmem:[#allocation11 + $0x1d0] sm:$0xff]
    %v562 = vld [vmem:[#allocation11 + $0x1d8] sm:$0xff]
    %v563 = vld [vmem:[#allocation11 + $0x1e0] sm:$0xff]
    %v564 = vld [vmem:[#allocation11 + $0x1e8] sm:$0xff]
    %v565 = vld [vmem:[#allocation11 + $0x1f0] sm:$0xff]
    %v566 = vld [vmem:[#allocation11 + $0x1f8] sm:$0xff]
    %v567 = vld [vmem:[#allocation11 + $0x200] sm:$0xff]
    %v568 = vld [vmem:[#allocation11 + $0x208] sm:$0xff]
    %v569 = vld [vmem:[#allocation11 + $0x210] sm:$0xff]
    %v570 = vld [vmem:[#allocation11 + $0x218] sm:$0xff]
    %v571 = vld [vmem:[#allocation11 + $0x220] sm:$0xff]
    %v572 = vld [vmem:[#allocation11 + $0x228] sm:$0xff]
    %v573 = vld [vmem:[#allocation11 + $0x230] sm:$0xff]
    %v574 = vld [vmem:[#allocation11 + $0x238] sm:$0xff]
    %v575 = vld [vmem:[#allocation11 + $0x240] sm:$0xff]
    %v576 = vld [vmem:[#allocation11 + $0x248] sm:$0xff]
    %v577 = vld [vmem:[#allocation11 + $0x250] sm:$0xff]
    %v578 = vld [vmem:[#allocation11 + $0x258] sm:$0xff]
    %v579 = vld [vmem:[#allocation11 + $0x260] sm:$0xff]
    %v580 = vld [vmem:[#allocation11 + $0x268] sm:$0xff]
    %v581 = vld [vmem:[#allocation11 + $0x270] sm:$0xff]
    %v582 = vld [vmem:[#allocation11 + $0x278] sm:$0xff]
    %v583 = vld [vmem:[#allocation11 + $0x280] sm:$0xff]
    %v584 = vld [vmem:[#allocation11 + $0x288] sm:$0xff]
    %v585 = vld [vmem:[#allocation11 + $0x290] sm:$0xff]
    %v586 = vld [vmem:[#allocation11 + $0x298] sm:$0xff]
    %v587 = vld [vmem:[#allocation11 + $0x2a0] sm:$0xff]
    %v588 = vld [vmem:[#allocation11 + $0x2a8] sm:$0xff]
    %v589 = vld [vmem:[#allocation11 + $0x2b0] sm:$0xff]
    %v590 = vld [vmem:[#allocation11 + $0x2b8] sm:$0xff]
    %v591 = vld [vmem:[#allocation11 + $0x2c0] sm:$0xff]
    %v592 = vld [vmem:[#allocation11 + $0x2c8] sm:$0xff]
    %v593 = vld [vmem:[#allocation11 + $0x2d0] sm:$0xff]
    %v594 = vld [vmem:[#allocation11 + $0x2d8] sm:$0xff]
    %v595 = vld [vmem:[#allocation11 + $0x2e0] sm:$0xff]
    %v596 = vld [vmem:[#allocation11 + $0x2e8] sm:$0xff]
    %v597 = vld [vmem:[#allocation11 + $0x2f0] sm:$0xff]
    %v598 = vld [vmem:[#allocation11 + $0x2f8] sm:$0xff]
    %v599 = vld [vmem:[#allocation11 + $0x300] sm:$0xff]
    %v600 = vld [vmem:[#allocation11 + $0x308] sm:$0xff]
    %v601 = vld [vmem:[#allocation11 + $0x310] sm:$0xff]
    %v602 = vld [vmem:[#allocation11 + $0x318] sm:$0xff]
    %v603 = vld [vmem:[#allocation11 + $0x320] sm:$0xff]
    %v604 = vld [vmem:[#allocation11 + $0x328] sm:$0xff]
    %v605 = vld [vmem:[#allocation11 + $0x330] sm:$0xff]
    %v606 = vld [vmem:[#allocation11 + $0x338] sm:$0xff]
    %v607 = vld [vmem:[#allocation11 + $0x340] sm:$0xff]
    %v608 = vld [vmem:[#allocation11 + $0x348] sm:$0xff]
    %v609 = vld [vmem:[#allocation11 + $0x350] sm:$0xff]
    %v610 = vld [vmem:[#allocation11 + $0x358] sm:$0xff]
    %v611 = vld [vmem:[#allocation11 + $0x360] sm:$0xff]
    %v612 = vld [vmem:[#allocation11 + $0x368] sm:$0xff]
    %v613 = vld [vmem:[#allocation11 + $0x370] sm:$0xff]
    %v614 = vld [vmem:[#allocation11 + $0x378] sm:$0xff]
    %v615 = vld [vmem:[#allocation11 + $0x380] sm:$0xff]
    %v616 = vld [vmem:[#allocation11 + $0x388] sm:$0xff]
    %v617 = vld [vmem:[#allocation11 + $0x390] sm:$0xff]
    %v618 = vld [vmem:[#allocation11 + $0x398] sm:$0xff]
    %v619 = vld [vmem:[#allocation11 + $0x3a0] sm:$0xff]
    %v620 = vld [vmem:[#allocation11 + $0x3a8] sm:$0xff]
    %v621 = vld [vmem:[#allocation11 + $0x3b0] sm:$0xff]
    %v622 = vld [vmem:[#allocation11 + $0x3b8] sm:$0xff]
    %v623 = vld [vmem:[#allocation11 + $0x3c0] sm:$0xff]
    %v624 = vld [vmem:[#allocation11 + $0x3c8] sm:$0xff]
    %v625 = vld [vmem:[#allocation11 + $0x3d0] sm:$0xff]
    %v626 = vld [vmem:[#allocation11 + $0x3d8] sm:$0xff]
    %v627 = vld [vmem:[#allocation11 + $0x3e0] sm:$0xff]
    %v628 = vld [vmem:[#allocation11 + $0x3e8] sm:$0xff]
    %v629 = vld [vmem:[#allocation11 + $0x3f0] sm:$0xff]
    %v630 = vld [vmem:[#allocation11 + $0x3f8] sm:$0xff]
    %v631 = vld [vmem:[#allocation11 + $0x400] sm:$0xff]
    %v632 = vld [vmem:[#allocation11 + $0x408] sm:$0xff]
    %v633 = vld [vmem:[#allocation11 + $0x410] sm:$0xff]
    %v634 = vld [vmem:[#allocation11 + $0x418] sm:$0xff]
    %v635 = vld [vmem:[#allocation11 + $0x420] sm:$0xff]
    %v636 = vld [vmem:[#allocation11 + $0x428] sm:$0xff]
    %v637 = vld [vmem:[#allocation11 + $0x430] sm:$0xff]
    %v638 = vld [vmem:[#allocation11 + $0x438] sm:$0xff]
    %v639 = vld [vmem:[#allocation11 + $0x440] sm:$0xff]
    %v640 = vld [vmem:[#allocation11 + $0x448] sm:$0xff]
    %v641 = vld [vmem:[#allocation11 + $0x450] sm:$0xff]
    %v642 = vld [vmem:[#allocation11 + $0x458] sm:$0xff]
    %v643 = vld [vmem:[#allocation11 + $0x460] sm:$0xff]
    %v644 = vld [vmem:[#allocation11 + $0x468] sm:$0xff]
    %v645 = vld [vmem:[#allocation11 + $0x470] sm:$0xff]
    %v646 = vld [vmem:[#allocation11 + $0x478] sm:$0xff]
    %v647 = vld [vmem:[#allocation11 + $0x480] sm:$0xff]
    %v648 = vld [vmem:[#allocation11 + $0x488] sm:$0xff]
    %v649 = vld [vmem:[#allocation11 + $0x490] sm:$0xff]
    %v650 = vld [vmem:[#allocation11 + $0x498] sm:$0xff]
    %v651 = vld [vmem:[#allocation11 + $0x4a0] sm:$0xff]
    %v652 = vld [vmem:[#allocation11 + $0x4a8] sm:$0xff]
    %v653 = vld [vmem:[#allocation11 + $0x4b0] sm:$0xff]
    %v654 = vld [vmem:[#allocation11 + $0x4b8] sm:$0xff]
    %v655 = vld [vmem:[#allocation11 + $0x4c0] sm:$0xff]
    %v656 = vld [vmem:[#allocation11 + $0x4c8] sm:$0xff]
    %v657 = vld [vmem:[#allocation11 + $0x4d0] sm:$0xff]
    %v658 = vld [vmem:[#allocation11 + $0x4d8] sm:$0xff]
    %v659 = vld [vmem:[#allocation11 + $0x4e0] sm:$0xff]
    %v660 = vld [vmem:[#allocation11 + $0x4e8] sm:$0xff]
    %v661 = vld [vmem:[#allocation11 + $0x4f0] sm:$0xff]
    %v662 = vld [vmem:[#allocation11 + $0x4f8] sm:$0xff]
    %v663 = vld [vmem:[#allocation11 + $0x500] sm:$0xff]
    %v664 = vld [vmem:[#allocation11 + $0x508] sm:$0xff]
    %v665 = vld [vmem:[#allocation11 + $0x510] sm:$0xff]
    %v666 = vld [vmem:[#allocation11 + $0x518] sm:$0xff]
    %v667 = vld [vmem:[#allocation11 + $0x520] sm:$0xff]
    %v668 = vld [vmem:[#allocation11 + $0x528] sm:$0xff]
    %v669 = vld [vmem:[#allocation11 + $0x530] sm:$0xff]
    %v670 = vld [vmem:[#allocation11 + $0x538] sm:$0xff]
    %v671 = vld [vmem:[#allocation11 + $0x540] sm:$0xff]
    %v672 = vld [vmem:[#allocation11 + $0x548] sm:$0xff]
    %v673 = vld [vmem:[#allocation11 + $0x550] sm:$0xff]
    %v674 = vld [vmem:[#allocation11 + $0x558] sm:$0xff]
    %v675 = vld [vmem:[#allocation11 + $0x560] sm:$0xff]
    %v676 = vld [vmem:[#allocation11 + $0x568] sm:$0xff]
    %v677 = vld [vmem:[#allocation11 + $0x570] sm:$0xff]
    %v678 = vld [vmem:[#allocation11 + $0x578] sm:$0xff]
    %v679 = vld [vmem:[#allocation11 + $0x580] sm:$0xff]
    %v680 = vld [vmem:[#allocation11 + $0x588] sm:$0xff]
    %v681 = vld [vmem:[#allocation11 + $0x590] sm:$0xff]
    %v682 = vld [vmem:[#allocation11 + $0x598] sm:$0xff]
    %v683 = vld [vmem:[#allocation11 + $0x5a0] sm:$0xff]
    %v684 = vld [vmem:[#allocation11 + $0x5a8] sm:$0xff]
    %v685 = vld [vmem:[#allocation11 + $0x5b0] sm:$0xff]
    %v686 = vld [vmem:[#allocation11 + $0x5b8] sm:$0xff]
    %v687 = vld [vmem:[#allocation11 + $0x5c0] sm:$0xff]
    %v688 = vld [vmem:[#allocation11 + $0x5c8] sm:$0xff]
    %v689 = vld [vmem:[#allocation11 + $0x5d0] sm:$0xff]
    %v690 = vld [vmem:[#allocation11 + $0x5d8] sm:$0xff]
    %v691 = vld [vmem:[#allocation11 + $0x5e0] sm:$0xff]
    %v692 = vld [vmem:[#allocation11 + $0x5e8] sm:$0xff]
    %v693 = vld [vmem:[#allocation11 + $0x5f0] sm:$0xff]
    %v694 = vld [vmem:[#allocation11 + $0x5f8] sm:$0xff]
    %v695 = vld [vmem:[#allocation11 + $0x600] sm:$0xff]
    %v696 = vld [vmem:[#allocation11 + $0x608] sm:$0xff]
    %v697 = vld [vmem:[#allocation11 + $0x610] sm:$0xff]
    %v698 = vld [vmem:[#allocation11 + $0x618] sm:$0xff]
    %v699 = vld [vmem:[#allocation11 + $0x620] sm:$0xff]
    %v700 = vld [vmem:[#allocation11 + $0x628] sm:$0xff]
    %v701 = vld [vmem:[#allocation11 + $0x630] sm:$0xff]
    %v702 = vld [vmem:[#allocation11 + $0x638] sm:$0xff]
    %v703 = vld [vmem:[#allocation11 + $0x640] sm:$0xff]
    %v704 = vld [vmem:[#allocation11 + $0x648] sm:$0xff]
    %v705 = vld [vmem:[#allocation11 + $0x650] sm:$0xff]
    %v706 = vld [vmem:[#allocation11 + $0x658] sm:$0xff]
    %v707 = vld [vmem:[#allocation11 + $0x660] sm:$0xff]
    %v708 = vld [vmem:[#allocation11 + $0x668] sm:$0xff]
    %v709 = vld [vmem:[#allocation11 + $0x670] sm:$0xff]
    %v710 = vld [vmem:[#allocation11 + $0x678] sm:$0xff]
    %v711 = vld [vmem:[#allocation11 + $0x680] sm:$0xff]
    %v712 = vld [vmem:[#allocation11 + $0x688] sm:$0xff]
    %v713 = vld [vmem:[#allocation11 + $0x690] sm:$0xff]
    %v714 = vld [vmem:[#allocation11 + $0x698] sm:$0xff]
    %v715 = vld [vmem:[#allocation11 + $0x6a0] sm:$0xff]
    %v716 = vld [vmem:[#allocation11 + $0x6a8] sm:$0xff]
    %v717 = vld [vmem:[#allocation11 + $0x6b0] sm:$0xff]
    %v718 = vld [vmem:[#allocation11 + $0x6b8] sm:$0xff]
    %v719 = vld [vmem:[#allocation11 + $0x6c0] sm:$0xff]
    %v720 = vld [vmem:[#allocation11 + $0x6c8] sm:$0xff]
    %v721 = vld [vmem:[#allocation11 + $0x6d0] sm:$0xff]
    %v722 = vld [vmem:[#allocation11 + $0x6d8] sm:$0xff]
    %v723 = vld [vmem:[#allocation11 + $0x6e0] sm:$0xff]
    %v724 = vld [vmem:[#allocation11 + $0x6e8] sm:$0xff]
    %v725 = vld [vmem:[#allocation11 + $0x6f0] sm:$0xff]
    %v726 = vld [vmem:[#allocation11 + $0x6f8] sm:$0xff]
    %v727 = vld [vmem:[#allocation11 + $0x700] sm:$0xff]
    %v728 = vld [vmem:[#allocation11 + $0x708] sm:$0xff]
    %v729 = vld [vmem:[#allocation11 + $0x710] sm:$0xff]
    %v730 = vld [vmem:[#allocation11 + $0x718] sm:$0xff]
    %v731 = vld [vmem:[#allocation11 + $0x720] sm:$0xff]
    %v732 = vld [vmem:[#allocation11 + $0x728] sm:$0xff]
    %v733 = vld [vmem:[#allocation11 + $0x730] sm:$0xff]
    %v734 = vld [vmem:[#allocation11 + $0x738] sm:$0xff]
    %v735 = vld [vmem:[#allocation11 + $0x740] sm:$0xff]
    %v736 = vld [vmem:[#allocation11 + $0x748] sm:$0xff]
    %v737 = vld [vmem:[#allocation11 + $0x750] sm:$0xff]
    %v738 = vld [vmem:[#allocation11 + $0x758] sm:$0xff]
    %v739 = vld [vmem:[#allocation11 + $0x760] sm:$0xff]
    %v740 = vld [vmem:[#allocation11 + $0x768] sm:$0xff]
    %v741 = vld [vmem:[#allocation11 + $0x770] sm:$0xff]
    %v742 = vld [vmem:[#allocation11 + $0x778] sm:$0xff]
    %v743 = vld [vmem:[#allocation11 + $0x780] sm:$0xff]
    %v744 = vld [vmem:[#allocation11 + $0x788] sm:$0xff]
    %v745 = vld [vmem:[#allocation11 + $0x790] sm:$0xff]
    %v746 = vld [vmem:[#allocation11 + $0x798] sm:$0xff]
    %v747 = vld [vmem:[#allocation11 + $0x7a0] sm:$0xff]
    %v748 = vld [vmem:[#allocation11 + $0x7a8] sm:$0xff]
    %v749 = vld [vmem:[#allocation11 + $0x7b0] sm:$0xff]
    %v750 = vld [vmem:[#allocation11 + $0x7b8] sm:$0xff]
    %v751 = vld [vmem:[#allocation11 + $0x7c0] sm:$0xff]
    %v752 = vld [vmem:[#allocation11 + $0x7c8] sm:$0xff]
    %v753 = vld [vmem:[#allocation11 + $0x7d0] sm:$0xff]
    %v754 = vld [vmem:[#allocation11 + $0x7d8] sm:$0xff]
    %v755 = vld [vmem:[#allocation11 + $0x7e0] sm:$0xff]
    %v756 = vld [vmem:[#allocation11 + $0x7e8] sm:$0xff]
    %v757 = vld [vmem:[#allocation11 + $0x7f0] sm:$0xff]
    %v758 = vld [vmem:[#allocation11 + $0x7f8] sm:$0xff]
    %v759 = vld [vmem:[%s6] sm:$0xf]
    %v761 = vperm.slane %v759, 0
    %v762 = vperm.slane %v759, 1
    %v763 = vperm.slane %v759, 2
    %v764 = vperm.slane %v759, 3
    %v1025 = vunpack.c.l.b16 %v503
    %v1026 = vunpack.c.h.b16 %v503
    %v1027 = vunpack.c.l.b16 %v504
    %v1028 = vunpack.c.h.b16 %v504
    %v1029 = vunpack.c.l.b16 %v505
    %v1030 = vunpack.c.h.b16 %v505
    %v1031 = vunpack.c.l.b16 %v506
    %v1032 = vunpack.c.h.b16 %v506
    %v1033 = vunpack.c.l.b16 %v507
    %v1034 = vunpack.c.h.b16 %v507
    %v1035 = vunpack.c.l.b16 %v508
    %v1036 = vunpack.c.h.b16 %v508
    %v1037 = vunpack.c.l.b16 %v509
    %v1038 = vunpack.c.h.b16 %v509
    %v1039 = vunpack.c.l.b16 %v510
    %v1040 = vunpack.c.h.b16 %v510
    %v1041 = vunpack.c.l.b16 %v511
    %v1042 = vunpack.c.h.b16 %v511
    %v1043 = vunpack.c.l.b16 %v512
    %v1044 = vunpack.c.h.b16 %v512
    %v1045 = vunpack.c.l.b16 %v513
    %v1046 = vunpack.c.h.b16 %v513
    %v1047 = vunpack.c.l.b16 %v514
    %v1048 = vunpack.c.h.b16 %v514
    %v1049 = vunpack.c.l.b16 %v515
    %v1050 = vunpack.c.h.b16 %v515
    %v1051 = vunpack.c.l.b16 %v516
    %v1052 = vunpack.c.h.b16 %v516
    %v1053 = vunpack.c.l.b16 %v517
    %v1054 = vunpack.c.h.b16 %v517
    %v1055 = vunpack.c.l.b16 %v518
    %v1056 = vunpack.c.h.b16 %v518
    %v1057 = vunpack.c.l.b16 %v519
    %v1058 = vunpack.c.h.b16 %v519
    %v1059 = vunpack.c.l.b16 %v520
    %v1060 = vunpack.c.h.b16 %v520
    %v1061 = vunpack.c.l.b16 %v521
    %v1062 = vunpack.c.h.b16 %v521
    %v1063 = vunpack.c.l.b16 %v522
    %v1064 = vunpack.c.h.b16 %v522
    %v1065 = vunpack.c.l.b16 %v523
    %v1066 = vunpack.c.h.b16 %v523
    %v1067 = vunpack.c.l.b16 %v524
    %v1068 = vunpack.c.h.b16 %v524
    %v1069 = vunpack.c.l.b16 %v525
    %v1070 = vunpack.c.h.b16 %v525
    %v1071 = vunpack.c.l.b16 %v526
    %v1072 = vunpack.c.h.b16 %v526
    %v1073 = vunpack.c.l.b16 %v527
    %v1074 = vunpack.c.h.b16 %v527
    %v1075 = vunpack.c.l.b16 %v528
    %v1076 = vunpack.c.h.b16 %v528
    %v1077 = vunpack.c.l.b16 %v529
    %v1078 = vunpack.c.h.b16 %v529
    %v1079 = vunpack.c.l.b16 %v530
    %v1080 = vunpack.c.h.b16 %v530
    %v1081 = vunpack.c.l.b16 %v531
    %v1082 = vunpack.c.h.b16 %v531
    %v1083 = vunpack.c.l.b16 %v532
    %v1084 = vunpack.c.h.b16 %v532
    %v1085 = vunpack.c.l.b16 %v533
    %v1086 = vunpack.c.h.b16 %v533
    %v1087 = vunpack.c.l.b16 %v534
    %v1088 = vunpack.c.h.b16 %v534
    %v1089 = vunpack.c.l.b16 %v535
    %v1090 = vunpack.c.h.b16 %v535
    %v1091 = vunpack.c.l.b16 %v536
    %v1092 = vunpack.c.h.b16 %v536
    %v1093 = vunpack.c.l.b16 %v537
    %v1094 = vunpack.c.h.b16 %v537
    %v1095 = vunpack.c.l.b16 %v538
    %v1096 = vunpack.c.h.b16 %v538
    %v1097 = vunpack.c.l.b16 %v539
    %v1098 = vunpack.c.h.b16 %v539
    %v1099 = vunpack.c.l.b16 %v540
    %v1100 = vunpack.c.h.b16 %v540
    %v1101 = vunpack.c.l.b16 %v541
    %v1102 = vunpack.c.h.b16 %v541
    %v1103 = vunpack.c.l.b16 %v542
    %v1104 = vunpack.c.h.b16 %v542
    %v1105 = vunpack.c.l.b16 %v543
    %v1106 = vunpack.c.h.b16 %v543
    %v1107 = vunpack.c.l.b16 %v544
    %v1108 = vunpack.c.h.b16 %v544
    %v1109 = vunpack.c.l.b16 %v545
    %v1110 = vunpack.c.h.b16 %v545
    %v1111 = vunpack.c.l.b16 %v546
    %v1112 = vunpack.c.h.b16 %v546
    %v1113 = vunpack.c.l.b16 %v547
    %v1114 = vunpack.c.h.b16 %v547
    %v1115 = vunpack.c.l.b16 %v548
    %v1116 = vunpack.c.h.b16 %v548
    %v1117 = vunpack.c.l.b16 %v549
    %v1118 = vunpack.c.h.b16 %v549
    %v1119 = vunpack.c.l.b16 %v550
    %v1120 = vunpack.c.h.b16 %v550
    %v1121 = vunpack.c.l.b16 %v551
    %v1122 = vunpack.c.h.b16 %v551
    %v1123 = vunpack.c.l.b16 %v552
    %v1124 = vunpack.c.h.b16 %v552
    %v1125 = vunpack.c.l.b16 %v553
    %v1126 = vunpack.c.h.b16 %v553
    %v1127 = vunpack.c.l.b16 %v554
    %v1128 = vunpack.c.h.b16 %v554
    %v1129 = vunpack.c.l.b16 %v555
    %v1130 = vunpack.c.h.b16 %v555
    %v1131 = vunpack.c.l.b16 %v556
    %v1132 = vunpack.c.h.b16 %v556
    %v1133 = vunpack.c.l.b16 %v557
    %v1134 = vunpack.c.h.b16 %v557
    %v1135 = vunpack.c.l.b16 %v558
    %v1136 = vunpack.c.h.b16 %v558
    %v1137 = vunpack.c.l.b16 %v559
    %v1138 = vunpack.c.h.b16 %v559
    %v1139 = vunpack.c.l.b16 %v560
    %v1140 = vunpack.c.h.b16 %v560
    %v1141 = vunpack.c.l.b16 %v561
    %v1142 = vunpack.c.h.b16 %v561
    %v1143 = vunpack.c.l.b16 %v562
    %v1144 = vunpack.c.h.b16 %v562
    %v1145 = vunpack.c.l.b16 %v563
    %v1146 = vunpack.c.h.b16 %v563
    %v1147 = vunpack.c.l.b16 %v564
    %v1148 = vunpack.c.h.b16 %v564
    %v1149 = vunpack.c.l.b16 %v565
    %v1150 = vunpack.c.h.b16 %v565
    %v1151 = vunpack.c.l.b16 %v566
    %v1152 = vunpack.c.h.b16 %v566
    %v1153 = vunpack.c.l.b16 %v567
    %v1154 = vunpack.c.h.b16 %v567
    %v1155 = vunpack.c.l.b16 %v568
    %v1156 = vunpack.c.h.b16 %v568
    %v1157 = vunpack.c.l.b16 %v569
    %v1158 = vunpack.c.h.b16 %v569
    %v1159 = vunpack.c.l.b16 %v570
    %v1160 = vunpack.c.h.b16 %v570
    %v1161 = vunpack.c.l.b16 %v571
    %v1162 = vunpack.c.h.b16 %v571
    %v1163 = vunpack.c.l.b16 %v572
    %v1164 = vunpack.c.h.b16 %v572
    %v1165 = vunpack.c.l.b16 %v573
    %v1166 = vunpack.c.h.b16 %v573
    %v1167 = vunpack.c.l.b16 %v574
    %v1168 = vunpack.c.h.b16 %v574
    %v1169 = vunpack.c.l.b16 %v575
    %v1170 = vunpack.c.h.b16 %v575
    %v1171 = vunpack.c.l.b16 %v576
    %v1172 = vunpack.c.h.b16 %v576
    %v1173 = vunpack.c.l.b16 %v577
    %v1174 = vunpack.c.h.b16 %v577
    %v1175 = vunpack.c.l.b16 %v578
    %v1176 = vunpack.c.h.b16 %v578
    %v1177 = vunpack.c.l.b16 %v579
    %v1178 = vunpack.c.h.b16 %v579
    %v1179 = vunpack.c.l.b16 %v580
    %v1180 = vunpack.c.h.b16 %v580
    %v1181 = vunpack.c.l.b16 %v581
    %v1182 = vunpack.c.h.b16 %v581
    %v1183 = vunpack.c.l.b16 %v582
    %v1184 = vunpack.c.h.b16 %v582
    %v1185 = vunpack.c.l.b16 %v583
    %v1186 = vunpack.c.h.b16 %v583
    %v1187 = vunpack.c.l.b16 %v584
    %v1188 = vunpack.c.h.b16 %v584
    %v1189 = vunpack.c.l.b16 %v585
    %v1190 = vunpack.c.h.b16 %v585
    %v1191 = vunpack.c.l.b16 %v586
    %v1192 = vunpack.c.h.b16 %v586
    %v1193 = vunpack.c.l.b16 %v587
    %v1194 = vunpack.c.h.b16 %v587
    %v1195 = vunpack.c.l.b16 %v588
    %v1196 = vunpack.c.h.b16 %v588
    %v1197 = vunpack.c.l.b16 %v589
    %v1198 = vunpack.c.h.b16 %v589
    %v1199 = vunpack.c.l.b16 %v590
    %v1200 = vunpack.c.h.b16 %v590
    %v1201 = vunpack.c.l.b16 %v591
    %v1202 = vunpack.c.h.b16 %v591
    %v1203 = vunpack.c.l.b16 %v592
    %v1204 = vunpack.c.h.b16 %v592
    %v1205 = vunpack.c.l.b16 %v593
    %v1206 = vunpack.c.h.b16 %v593
    %v1207 = vunpack.c.l.b16 %v594
    %v1208 = vunpack.c.h.b16 %v594
    %v1209 = vunpack.c.l.b16 %v595
    %v1210 = vunpack.c.h.b16 %v595
    %v1211 = vunpack.c.l.b16 %v596
    %v1212 = vunpack.c.h.b16 %v596
    %v1213 = vunpack.c.l.b16 %v597
    %v1214 = vunpack.c.h.b16 %v597
    %v1215 = vunpack.c.l.b16 %v598
    %v1216 = vunpack.c.h.b16 %v598
    %v1217 = vunpack.c.l.b16 %v599
    %v1218 = vunpack.c.h.b16 %v599
    %v1219 = vunpack.c.l.b16 %v600
    %v1220 = vunpack.c.h.b16 %v600
    %v1221 = vunpack.c.l.b16 %v601
    %v1222 = vunpack.c.h.b16 %v601
    %v1223 = vunpack.c.l.b16 %v602
    %v1224 = vunpack.c.h.b16 %v602
    %v1225 = vunpack.c.l.b16 %v603
    %v1226 = vunpack.c.h.b16 %v603
    %v1227 = vunpack.c.l.b16 %v604
    %v1228 = vunpack.c.h.b16 %v604
    %v1229 = vunpack.c.l.b16 %v605
    %v1230 = vunpack.c.h.b16 %v605
    %v1231 = vunpack.c.l.b16 %v606
    %v1232 = vunpack.c.h.b16 %v606
    %v1233 = vunpack.c.l.b16 %v607
    %v1234 = vunpack.c.h.b16 %v607
    %v1235 = vunpack.c.l.b16 %v608
    %v1236 = vunpack.c.h.b16 %v608
    %v1237 = vunpack.c.l.b16 %v609
    %v1238 = vunpack.c.h.b16 %v609
    %v1239 = vunpack.c.l.b16 %v610
    %v1240 = vunpack.c.h.b16 %v610
    %v1241 = vunpack.c.l.b16 %v611
    %v1242 = vunpack.c.h.b16 %v611
    %v1243 = vunpack.c.l.b16 %v612
    %v1244 = vunpack.c.h.b16 %v612
    %v1245 = vunpack.c.l.b16 %v613
    %v1246 = vunpack.c.h.b16 %v613
    %v1247 = vunpack.c.l.b16 %v614
    %v1248 = vunpack.c.h.b16 %v614
    %v1249 = vunpack.c.l.b16 %v615
    %v1250 = vunpack.c.h.b16 %v615
    %v1251 = vunpack.c.l.b16 %v616
    %v1252 = vunpack.c.h.b16 %v616
    %v1253 = vunpack.c.l.b16 %v617
    %v1254 = vunpack.c.h.b16 %v617
    %v1255 = vunpack.c.l.b16 %v618
    %v1256 = vunpack.c.h.b16 %v618
    %v1257 = vunpack.c.l.b16 %v619
    %v1258 = vunpack.c.h.b16 %v619
    %v1259 = vunpack.c.l.b16 %v620
    %v1260 = vunpack.c.h.b16 %v620
    %v1261 = vunpack.c.l.b16 %v621
    %v1262 = vunpack.c.h.b16 %v621
    %v1263 = vunpack.c.l.b16 %v622
    %v1264 = vunpack.c.h.b16 %v622
    %v1265 = vunpack.c.l.b16 %v623
    %v1266 = vunpack.c.h.b16 %v623
    %v1267 = vunpack.c.l.b16 %v624
    %v1268 = vunpack.c.h.b16 %v624
    %v1269 = vunpack.c.l.b16 %v625
    %v1270 = vunpack.c.h.b16 %v625
    %v1271 = vunpack.c.l.b16 %v626
    %v1272 = vunpack.c.h.b16 %v626
    %v1273 = vunpack.c.l.b16 %v627
    %v1274 = vunpack.c.h.b16 %v627
    %v1275 = vunpack.c.l.b16 %v628
    %v1276 = vunpack.c.h.b16 %v628
    %v1277 = vunpack.c.l.b16 %v629
    %v1278 = vunpack.c.h.b16 %v629
    %v1279 = vunpack.c.l.b16 %v630
    %v1280 = vunpack.c.h.b16 %v630
    %v1281 = vunpack.c.l.b16 %v631
    %v1282 = vunpack.c.h.b16 %v631
    %v1283 = vunpack.c.l.b16 %v632
    %v1284 = vunpack.c.h.b16 %v632
    %v1285 = vunpack.c.l.b16 %v633
    %v1286 = vunpack.c.h.b16 %v633
    %v1287 = vunpack.c.l.b16 %v634
    %v1288 = vunpack.c.h.b16 %v634
    %v1289 = vunpack.c.l.b16 %v635
    %v1290 = vunpack.c.h.b16 %v635
    %v1291 = vunpack.c.l.b16 %v636
    %v1292 = vunpack.c.h.b16 %v636
    %v1293 = vunpack.c.l.b16 %v637
    %v1294 = vunpack.c.h.b16 %v637
    %v1295 = vunpack.c.l.b16 %v638
    %v1296 = vunpack.c.h.b16 %v638
    %v1297 = vunpack.c.l.b16 %v639
    %v1298 = vunpack.c.h.b16 %v639
    %v1299 = vunpack.c.l.b16 %v640
    %v1300 = vunpack.c.h.b16 %v640
    %v1301 = vunpack.c.l.b16 %v641
    %v1302 = vunpack.c.h.b16 %v641
    %v1303 = vunpack.c.l.b16 %v642
    %v1304 = vunpack.c.h.b16 %v642
    %v1305 = vunpack.c.l.b16 %v643
    %v1306 = vunpack.c.h.b16 %v643
    %v1307 = vunpack.c.l.b16 %v644
    %v1308 = vunpack.c.h.b16 %v644
    %v1309 = vunpack.c.l.b16 %v645
    %v1310 = vunpack.c.h.b16 %v645
    %v1311 = vunpack.c.l.b16 %v646
    %v1312 = vunpack.c.h.b16 %v646
    %v1313 = vunpack.c.l.b16 %v647
    %v1314 = vunpack.c.h.b16 %v647
    %v1315 = vunpack.c.l.b16 %v648
    %v1316 = vunpack.c.h.b16 %v648
    %v1317 = vunpack.c.l.b16 %v649
    %v1318 = vunpack.c.h.b16 %v649
    %v1319 = vunpack.c.l.b16 %v650
    %v1320 = vunpack.c.h.b16 %v650
    %v1321 = vunpack.c.l.b16 %v651
    %v1322 = vunpack.c.h.b16 %v651
    %v1323 = vunpack.c.l.b16 %v652
    %v1324 = vunpack.c.h.b16 %v652
    %v1325 = vunpack.c.l.b16 %v653
    %v1326 = vunpack.c.h.b16 %v653
    %v1327 = vunpack.c.l.b16 %v654
    %v1328 = vunpack.c.h.b16 %v654
    %v1329 = vunpack.c.l.b16 %v655
    %v1330 = vunpack.c.h.b16 %v655
    %v1331 = vunpack.c.l.b16 %v656
    %v1332 = vunpack.c.h.b16 %v656
    %v1333 = vunpack.c.l.b16 %v657
    %v1334 = vunpack.c.h.b16 %v657
    %v1335 = vunpack.c.l.b16 %v658
    %v1336 = vunpack.c.h.b16 %v658
    %v1337 = vunpack.c.l.b16 %v659
    %v1338 = vunpack.c.h.b16 %v659
    %v1339 = vunpack.c.l.b16 %v660
    %v1340 = vunpack.c.h.b16 %v660
    %v1341 = vunpack.c.l.b16 %v661
    %v1342 = vunpack.c.h.b16 %v661
    %v1343 = vunpack.c.l.b16 %v662
    %v1344 = vunpack.c.h.b16 %v662
    %v1345 = vunpack.c.l.b16 %v663
    %v1346 = vunpack.c.h.b16 %v663
    %v1347 = vunpack.c.l.b16 %v664
    %v1348 = vunpack.c.h.b16 %v664
    %v1349 = vunpack.c.l.b16 %v665
    %v1350 = vunpack.c.h.b16 %v665
    %v1351 = vunpack.c.l.b16 %v666
    %v1352 = vunpack.c.h.b16 %v666
    %v1353 = vunpack.c.l.b16 %v667
    %v1354 = vunpack.c.h.b16 %v667
    %v1355 = vunpack.c.l.b16 %v668
    %v1356 = vunpack.c.h.b16 %v668
    %v1357 = vunpack.c.l.b16 %v669
    %v1358 = vunpack.c.h.b16 %v669
    %v1359 = vunpack.c.l.b16 %v670
    %v1360 = vunpack.c.h.b16 %v670
    %v1361 = vunpack.c.l.b16 %v671
    %v1362 = vunpack.c.h.b16 %v671
    %v1363 = vunpack.c.l.b16 %v672
    %v1364 = vunpack.c.h.b16 %v672
    %v1365 = vunpack.c.l.b16 %v673
    %v1366 = vunpack.c.h.b16 %v673
    %v1367 = vunpack.c.l.b16 %v674
    %v1368 = vunpack.c.h.b16 %v674
    %v1369 = vunpack.c.l.b16 %v675
    %v1370 = vunpack.c.h.b16 %v675
    %v1371 = vunpack.c.l.b16 %v676
    %v1372 = vunpack.c.h.b16 %v676
    %v1373 = vunpack.c.l.b16 %v677
    %v1374 = vunpack.c.h.b16 %v677
    %v1375 = vunpack.c.l.b16 %v678
    %v1376 = vunpack.c.h.b16 %v678
    %v1377 = vunpack.c.l.b16 %v679
    %v1378 = vunpack.c.h.b16 %v679
    %v1379 = vunpack.c.l.b16 %v680
    %v1380 = vunpack.c.h.b16 %v680
    %v1381 = vunpack.c.l.b16 %v681
    %v1382 = vunpack.c.h.b16 %v681
    %v1383 = vunpack.c.l.b16 %v682
    %v1384 = vunpack.c.h.b16 %v682
    %v1385 = vunpack.c.l.b16 %v683
    %v1386 = vunpack.c.h.b16 %v683
    %v1387 = vunpack.c.l.b16 %v684
    %v1388 = vunpack.c.h.b16 %v684
    %v1389 = vunpack.c.l.b16 %v685
    %v1390 = vunpack.c.h.b16 %v685
    %v1391 = vunpack.c.l.b16 %v686
    %v1392 = vunpack.c.h.b16 %v686
    %v1393 = vunpack.c.l.b16 %v687
    %v1394 = vunpack.c.h.b16 %v687
    %v1395 = vunpack.c.l.b16 %v688
    %v1396 = vunpack.c.h.b16 %v688
    %v1397 = vunpack.c.l.b16 %v689
    %v1398 = vunpack.c.h.b16 %v689
    %v1399 = vunpack.c.l.b16 %v690
    %v1400 = vunpack.c.h.b16 %v690
    %v1401 = vunpack.c.l.b16 %v691
    %v1402 = vunpack.c.h.b16 %v691
    %v1403 = vunpack.c.l.b16 %v692
    %v1404 = vunpack.c.h.b16 %v692
    %v1405 = vunpack.c.l.b16 %v693
    %v1406 = vunpack.c.h.b16 %v693
    %v1407 = vunpack.c.l.b16 %v694
    %v1408 = vunpack.c.h.b16 %v694
    %v1409 = vunpack.c.l.b16 %v695
    %v1410 = vunpack.c.h.b16 %v695
    %v1411 = vunpack.c.l.b16 %v696
    %v1412 = vunpack.c.h.b16 %v696
    %v1413 = vunpack.c.l.b16 %v697
    %v1414 = vunpack.c.h.b16 %v697
    %v1415 = vunpack.c.l.b16 %v698
    %v1416 = vunpack.c.h.b16 %v698
    %v1417 = vunpack.c.l.b16 %v699
    %v1418 = vunpack.c.h.b16 %v699
    %v1419 = vunpack.c.l.b16 %v700
    %v1420 = vunpack.c.h.b16 %v700
    %v1421 = vunpack.c.l.b16 %v701
    %v1422 = vunpack.c.h.b16 %v701
    %v1423 = vunpack.c.l.b16 %v702
    %v1424 = vunpack.c.h.b16 %v702
    %v1425 = vunpack.c.l.b16 %v703
    %v1426 = vunpack.c.h.b16 %v703
    %v1427 = vunpack.c.l.b16 %v704
    %v1428 = vunpack.c.h.b16 %v704
    %v1429 = vunpack.c.l.b16 %v705
    %v1430 = vunpack.c.h.b16 %v705
    %v1431 = vunpack.c.l.b16 %v706
    %v1432 = vunpack.c.h.b16 %v706
    %v1433 = vunpack.c.l.b16 %v707
    %v1434 = vunpack.c.h.b16 %v707
    %v1435 = vunpack.c.l.b16 %v708
    %v1436 = vunpack.c.h.b16 %v708
    %v1437 = vunpack.c.l.b16 %v709
    %v1438 = vunpack.c.h.b16 %v709
    %v1439 = vunpack.c.l.b16 %v710
    %v1440 = vunpack.c.h.b16 %v710
    %v1441 = vunpack.c.l.b16 %v711
    %v1442 = vunpack.c.h.b16 %v711
    %v1443 = vunpack.c.l.b16 %v712
    %v1444 = vunpack.c.h.b16 %v712
    %v1445 = vunpack.c.l.b16 %v713
    %v1446 = vunpack.c.h.b16 %v713
    %v1447 = vunpack.c.l.b16 %v714
    %v1448 = vunpack.c.h.b16 %v714
    %v1449 = vunpack.c.l.b16 %v715
    %v1450 = vunpack.c.h.b16 %v715
    %v1451 = vunpack.c.l.b16 %v716
    %v1452 = vunpack.c.h.b16 %v716
    %v1453 = vunpack.c.l.b16 %v717
    %v1454 = vunpack.c.h.b16 %v717
    %v1455 = vunpack.c.l.b16 %v718
    %v1456 = vunpack.c.h.b16 %v718
    %v1457 = vunpack.c.l.b16 %v719
    %v1458 = vunpack.c.h.b16 %v719
    %v1459 = vunpack.c.l.b16 %v720
    %v1460 = vunpack.c.h.b16 %v720
    %v1461 = vunpack.c.l.b16 %v721
    %v1462 = vunpack.c.h.b16 %v721
    %v1463 = vunpack.c.l.b16 %v722
    %v1464 = vunpack.c.h.b16 %v722
    %v1465 = vunpack.c.l.b16 %v723
    %v1466 = vunpack.c.h.b16 %v723
    %v1467 = vunpack.c.l.b16 %v724
    %v1468 = vunpack.c.h.b16 %v724
    %v1469 = vunpack.c.l.b16 %v725
    %v1470 = vunpack.c.h.b16 %v725
    %v1471 = vunpack.c.l.b16 %v726
    %v1472 = vunpack.c.h.b16 %v726
    %v1473 = vunpack.c.l.b16 %v727
    %v1474 = vunpack.c.h.b16 %v727
    %v1475 = vunpack.c.l.b16 %v728
    %v1476 = vunpack.c.h.b16 %v728
    %v1477 = vunpack.c.l.b16 %v729
    %v1478 = vunpack.c.h.b16 %v729
    %v1479 = vunpack.c.l.b16 %v730
    %v1480 = vunpack.c.h.b16 %v730
    %v1481 = vunpack.c.l.b16 %v731
    %v1482 = vunpack.c.h.b16 %v731
    %v1483 = vunpack.c.l.b16 %v732
    %v1484 = vunpack.c.h.b16 %v732
    %v1485 = vunpack.c.l.b16 %v733
    %v1486 = vunpack.c.h.b16 %v733
    %v1487 = vunpack.c.l.b16 %v734
    %v1488 = vunpack.c.h.b16 %v734
    %v1489 = vunpack.c.l.b16 %v735
    %v1490 = vunpack.c.h.b16 %v735
    %v1491 = vunpack.c.l.b16 %v736
    %v1492 = vunpack.c.h.b16 %v736
    %v1493 = vunpack.c.l.b16 %v737
    %v1494 = vunpack.c.h.b16 %v737
    %v1495 = vunpack.c.l.b16 %v738
    %v1496 = vunpack.c.h.b16 %v738
    %v1497 = vunpack.c.l.b16 %v739
    %v1498 = vunpack.c.h.b16 %v739
    %v1499 = vunpack.c.l.b16 %v740
    %v1500 = vunpack.c.h.b16 %v740
    %v1501 = vunpack.c.l.b16 %v741
    %v1502 = vunpack.c.h.b16 %v741
    %v1503 = vunpack.c.l.b16 %v742
    %v1504 = vunpack.c.h.b16 %v742
    %v1505 = vunpack.c.l.b16 %v743
    %v1506 = vunpack.c.h.b16 %v743
    %v1507 = vunpack.c.l.b16 %v744
    %v1508 = vunpack.c.h.b16 %v744
    %v1509 = vunpack.c.l.b16 %v745
    %v1510 = vunpack.c.h.b16 %v745
    %v1511 = vunpack.c.l.b16 %v746
    %v1512 = vunpack.c.h.b16 %v746
    %v1513 = vunpack.c.l.b16 %v747
    %v1514 = vunpack.c.h.b16 %v747
    %v1515 = vunpack.c.l.b16 %v748
    %v1516 = vunpack.c.h.b16 %v748
    %v1517 = vunpack.c.l.b16 %v749
    %v1518 = vunpack.c.h.b16 %v749
    %v1519 = vunpack.c.l.b16 %v750
    %v1520 = vunpack.c.h.b16 %v750
    %v1521 = vunpack.c.l.b16 %v751
    %v1522 = vunpack.c.h.b16 %v751
    %v1523 = vunpack.c.l.b16 %v752
    %v1524 = vunpack.c.h.b16 %v752
    %v1525 = vunpack.c.l.b16 %v753
    %v1526 = vunpack.c.h.b16 %v753
    %v1527 = vunpack.c.l.b16 %v754
    %v1528 = vunpack.c.h.b16 %v754
    %v1529 = vunpack.c.l.b16 %v755
    %v1530 = vunpack.c.h.b16 %v755
    %v1531 = vunpack.c.l.b16 %v756
    %v1532 = vunpack.c.h.b16 %v756
    %v1533 = vunpack.c.l.b16 %v757
    %v1534 = vunpack.c.h.b16 %v757
    %v1535 = vunpack.c.l.b16 %v758
    %v1536 = vunpack.c.h.b16 %v758
    %v1537 = vpack.c.b16 %v1029, %v1025
    %v1538 = vpack.c.b16 %v1030, %v1026
    %v1539 = vpack.c.b16 %v1031, %v1027
    %v1540 = vpack.c.b16 %v1032, %v1028
    %v1541 = vpack.c.b16 %v1037, %v1033
    %v1542 = vpack.c.b16 %v1038, %v1034
    %v1543 = vpack.c.b16 %v1039, %v1035
    %v1544 = vpack.c.b16 %v1040, %v1036
    %v1545 = vpack.c.b16 %v1045, %v1041
    %v1546 = vpack.c.b16 %v1046, %v1042
    %v1547 = vpack.c.b16 %v1047, %v1043
    %v1548 = vpack.c.b16 %v1048, %v1044
    %v1549 = vpack.c.b16 %v1053, %v1049
    %v1550 = vpack.c.b16 %v1054, %v1050
    %v1551 = vpack.c.b16 %v1055, %v1051
    %v1552 = vpack.c.b16 %v1056, %v1052
    %v1553 = vpack.c.b16 %v1061, %v1057
    %v1554 = vpack.c.b16 %v1062, %v1058
    %v1555 = vpack.c.b16 %v1063, %v1059
    %v1556 = vpack.c.b16 %v1064, %v1060
    %v1557 = vpack.c.b16 %v1069, %v1065
    %v1558 = vpack.c.b16 %v1070, %v1066
    %v1559 = vpack.c.b16 %v1071, %v1067
    %v1560 = vpack.c.b16 %v1072, %v1068
    %v1561 = vpack.c.b16 %v1077, %v1073
    %v1562 = vpack.c.b16 %v1078, %v1074
    %v1563 = vpack.c.b16 %v1079, %v1075
    %v1564 = vpack.c.b16 %v1080, %v1076
    %v1565 = vpack.c.b16 %v1085, %v1081
    %v1566 = vpack.c.b16 %v1086, %v1082
    %v1567 = vpack.c.b16 %v1087, %v1083
    %v1568 = vpack.c.b16 %v1088, %v1084
    %v1569 = vpack.c.b16 %v1093, %v1089
    %v1570 = vpack.c.b16 %v1094, %v1090
    %v1571 = vpack.c.b16 %v1095, %v1091
    %v1572 = vpack.c.b16 %v1096, %v1092
    %v1573 = vpack.c.b16 %v1101, %v1097
    %v1574 = vpack.c.b16 %v1102, %v1098
    %v1575 = vpack.c.b16 %v1103, %v1099
    %v1576 = vpack.c.b16 %v1104, %v1100
    %v1577 = vpack.c.b16 %v1109, %v1105
    %v1578 = vpack.c.b16 %v1110, %v1106
    %v1579 = vpack.c.b16 %v1111, %v1107
    %v1580 = vpack.c.b16 %v1112, %v1108
    %v1581 = vpack.c.b16 %v1117, %v1113
    %v1582 = vpack.c.b16 %v1118, %v1114
    %v1583 = vpack.c.b16 %v1119, %v1115
    %v1584 = vpack.c.b16 %v1120, %v1116
    %v1585 = vpack.c.b16 %v1125, %v1121
    %v1586 = vpack.c.b16 %v1126, %v1122
    %v1587 = vpack.c.b16 %v1127, %v1123
    %v1588 = vpack.c.b16 %v1128, %v1124
    %v1589 = vpack.c.b16 %v1133, %v1129
    %v1590 = vpack.c.b16 %v1134, %v1130
    %v1591 = vpack.c.b16 %v1135, %v1131
    %v1592 = vpack.c.b16 %v1136, %v1132
    %v1593 = vpack.c.b16 %v1141, %v1137
    %v1594 = vpack.c.b16 %v1142, %v1138
    %v1595 = vpack.c.b16 %v1143, %v1139
    %v1596 = vpack.c.b16 %v1144, %v1140
    %v1597 = vpack.c.b16 %v1149, %v1145
    %v1598 = vpack.c.b16 %v1150, %v1146
    %v1599 = vpack.c.b16 %v1151, %v1147
    %v1600 = vpack.c.b16 %v1152, %v1148
    %v1601 = vpack.c.b16 %v1157, %v1153
    %v1602 = vpack.c.b16 %v1158, %v1154
    %v1603 = vpack.c.b16 %v1159, %v1155
    %v1604 = vpack.c.b16 %v1160, %v1156
    %v1605 = vpack.c.b16 %v1165, %v1161
    %v1606 = vpack.c.b16 %v1166, %v1162
    %v1607 = vpack.c.b16 %v1167, %v1163
    %v1608 = vpack.c.b16 %v1168, %v1164
    %v1609 = vpack.c.b16 %v1173, %v1169
    %v1610 = vpack.c.b16 %v1174, %v1170
    %v1611 = vpack.c.b16 %v1175, %v1171
    %v1612 = vpack.c.b16 %v1176, %v1172
    %v1613 = vpack.c.b16 %v1181, %v1177
    %v1614 = vpack.c.b16 %v1182, %v1178
    %v1615 = vpack.c.b16 %v1183, %v1179
    %v1616 = vpack.c.b16 %v1184, %v1180
    %v1617 = vpack.c.b16 %v1189, %v1185
    %v1618 = vpack.c.b16 %v1190, %v1186
    %v1619 = vpack.c.b16 %v1191, %v1187
    %v1620 = vpack.c.b16 %v1192, %v1188
    %v1621 = vpack.c.b16 %v1197, %v1193
    %v1622 = vpack.c.b16 %v1198, %v1194
    %v1623 = vpack.c.b16 %v1199, %v1195
    %v1624 = vpack.c.b16 %v1200, %v1196
    %v1625 = vpack.c.b16 %v1205, %v1201
    %v1626 = vpack.c.b16 %v1206, %v1202
    %v1627 = vpack.c.b16 %v1207, %v1203
    %v1628 = vpack.c.b16 %v1208, %v1204
    %v1629 = vpack.c.b16 %v1213, %v1209
    %v1630 = vpack.c.b16 %v1214, %v1210
    %v1631 = vpack.c.b16 %v1215, %v1211
    %v1632 = vpack.c.b16 %v1216, %v1212
    %v1633 = vpack.c.b16 %v1221, %v1217
    %v1634 = vpack.c.b16 %v1222, %v1218
    %v1635 = vpack.c.b16 %v1223, %v1219
    %v1636 = vpack.c.b16 %v1224, %v1220
    %v1637 = vpack.c.b16 %v1229, %v1225
    %v1638 = vpack.c.b16 %v1230, %v1226
    %v1639 = vpack.c.b16 %v1231, %v1227
    %v1640 = vpack.c.b16 %v1232, %v1228
    %v1641 = vpack.c.b16 %v1237, %v1233
    %v1642 = vpack.c.b16 %v1238, %v1234
    %v1643 = vpack.c.b16 %v1239, %v1235
    %v1644 = vpack.c.b16 %v1240, %v1236
    %v1645 = vpack.c.b16 %v1245, %v1241
    %v1646 = vpack.c.b16 %v1246, %v1242
    %v1647 = vpack.c.b16 %v1247, %v1243
    %v1648 = vpack.c.b16 %v1248, %v1244
    %v1649 = vpack.c.b16 %v1253, %v1249
    %v1650 = vpack.c.b16 %v1254, %v1250
    %v1651 = vpack.c.b16 %v1255, %v1251
    %v1652 = vpack.c.b16 %v1256, %v1252
    %v1653 = vpack.c.b16 %v1261, %v1257
    %v1654 = vpack.c.b16 %v1262, %v1258
    %v1655 = vpack.c.b16 %v1263, %v1259
    %v1656 = vpack.c.b16 %v1264, %v1260
    %v1657 = vpack.c.b16 %v1269, %v1265
    %v1658 = vpack.c.b16 %v1270, %v1266
    %v1659 = vpack.c.b16 %v1271, %v1267
    %v1660 = vpack.c.b16 %v1272, %v1268
    %v1661 = vpack.c.b16 %v1277, %v1273
    %v1662 = vpack.c.b16 %v1278, %v1274
    %v1663 = vpack.c.b16 %v1279, %v1275
    %v1664 = vpack.c.b16 %v1280, %v1276
    %v1665 = vpack.c.b16 %v1285, %v1281
    %v1666 = vpack.c.b16 %v1286, %v1282
    %v1667 = vpack.c.b16 %v1287, %v1283
    %v1668 = vpack.c.b16 %v1288, %v1284
    %v1669 = vpack.c.b16 %v1293, %v1289
    %v1670 = vpack.c.b16 %v1294, %v1290
    %v1671 = vpack.c.b16 %v1295, %v1291
    %v1672 = vpack.c.b16 %v1296, %v1292
    %v1673 = vpack.c.b16 %v1301, %v1297
    %v1674 = vpack.c.b16 %v1302, %v1298
    %v1675 = vpack.c.b16 %v1303, %v1299
    %v1676 = vpack.c.b16 %v1304, %v1300
    %v1677 = vpack.c.b16 %v1309, %v1305
    %v1678 = vpack.c.b16 %v1310, %v1306
    %v1679 = vpack.c.b16 %v1311, %v1307
    %v1680 = vpack.c.b16 %v1312, %v1308
    %v1681 = vpack.c.b16 %v1317, %v1313
    %v1682 = vpack.c.b16 %v1318, %v1314
    %v1683 = vpack.c.b16 %v1319, %v1315
    %v1684 = vpack.c.b16 %v1320, %v1316
    %v1685 = vpack.c.b16 %v1325, %v1321
    %v1686 = vpack.c.b16 %v1326, %v1322
    %v1687 = vpack.c.b16 %v1327, %v1323
    %v1688 = vpack.c.b16 %v1328, %v1324
    %v1689 = vpack.c.b16 %v1333, %v1329
    %v1690 = vpack.c.b16 %v1334, %v1330
    %v1691 = vpack.c.b16 %v1335, %v1331
    %v1692 = vpack.c.b16 %v1336, %v1332
    %v1693 = vpack.c.b16 %v1341, %v1337
    %v1694 = vpack.c.b16 %v1342, %v1338
    %v1695 = vpack.c.b16 %v1343, %v1339
    %v1696 = vpack.c.b16 %v1344, %v1340
    %v1697 = vpack.c.b16 %v1349, %v1345
    %v1698 = vpack.c.b16 %v1350, %v1346
    %v1699 = vpack.c.b16 %v1351, %v1347
    %v1700 = vpack.c.b16 %v1352, %v1348
    %v1701 = vpack.c.b16 %v1357, %v1353
    %v1702 = vpack.c.b16 %v1358, %v1354
    %v1703 = vpack.c.b16 %v1359, %v1355
    %v1704 = vpack.c.b16 %v1360, %v1356
    %v1705 = vpack.c.b16 %v1365, %v1361
    %v1706 = vpack.c.b16 %v1366, %v1362
    %v1707 = vpack.c.b16 %v1367, %v1363
    %v1708 = vpack.c.b16 %v1368, %v1364
    %v1709 = vpack.c.b16 %v1373, %v1369
    %v1710 = vpack.c.b16 %v1374, %v1370
    %v1711 = vpack.c.b16 %v1375, %v1371
    %v1712 = vpack.c.b16 %v1376, %v1372
    %v1713 = vpack.c.b16 %v1381, %v1377
    %v1714 = vpack.c.b16 %v1382, %v1378
    %v1715 = vpack.c.b16 %v1383, %v1379
    %v1716 = vpack.c.b16 %v1384, %v1380
    %v1717 = vpack.c.b16 %v1389, %v1385
    %v1718 = vpack.c.b16 %v1390, %v1386
    %v1719 = vpack.c.b16 %v1391, %v1387
    %v1720 = vpack.c.b16 %v1392, %v1388
    %v1721 = vpack.c.b16 %v1397, %v1393
    %v1722 = vpack.c.b16 %v1398, %v1394
    %v1723 = vpack.c.b16 %v1399, %v1395
    %v1724 = vpack.c.b16 %v1400, %v1396
    %v1725 = vpack.c.b16 %v1405, %v1401
    %v1726 = vpack.c.b16 %v1406, %v1402
    %v1727 = vpack.c.b16 %v1407, %v1403
    %v1728 = vpack.c.b16 %v1408, %v1404
    %v1729 = vpack.c.b16 %v1413, %v1409
    %v1730 = vpack.c.b16 %v1414, %v1410
    %v1731 = vpack.c.b16 %v1415, %v1411
    %v1732 = vpack.c.b16 %v1416, %v1412
    %v1733 = vpack.c.b16 %v1421, %v1417
    %v1734 = vpack.c.b16 %v1422, %v1418
    %v1735 = vpack.c.b16 %v1423, %v1419
    %v1736 = vpack.c.b16 %v1424, %v1420
    %v1737 = vpack.c.b16 %v1429, %v1425
    %v1738 = vpack.c.b16 %v1430, %v1426
    %v1739 = vpack.c.b16 %v1431, %v1427
    %v1740 = vpack.c.b16 %v1432, %v1428
    %v1741 = vpack.c.b16 %v1437, %v1433
    %v1742 = vpack.c.b16 %v1438, %v1434
    %v1743 = vpack.c.b16 %v1439, %v1435
    %v1744 = vpack.c.b16 %v1440, %v1436
    %v1745 = vpack.c.b16 %v1445, %v1441
    %v1746 = vpack.c.b16 %v1446, %v1442
    %v1747 = vpack.c.b16 %v1447, %v1443
    %v1748 = vpack.c.b16 %v1448, %v1444
    %v1749 = vpack.c.b16 %v1453, %v1449
    %v1750 = vpack.c.b16 %v1454, %v1450
    %v1751 = vpack.c.b16 %v1455, %v1451
    %v1752 = vpack.c.b16 %v1456, %v1452
    %v1753 = vpack.c.b16 %v1461, %v1457
    %v1754 = vpack.c.b16 %v1462, %v1458
    %v1755 = vpack.c.b16 %v1463, %v1459
    %v1756 = vpack.c.b16 %v1464, %v1460
    %v1757 = vpack.c.b16 %v1469, %v1465
    %v1758 = vpack.c.b16 %v1470, %v1466
    %v1759 = vpack.c.b16 %v1471, %v1467
    %v1760 = vpack.c.b16 %v1472, %v1468
    %v1761 = vpack.c.b16 %v1477, %v1473
    %v1762 = vpack.c.b16 %v1478, %v1474
    %v1763 = vpack.c.b16 %v1479, %v1475
    %v1764 = vpack.c.b16 %v1480, %v1476
    %v1765 = vpack.c.b16 %v1485, %v1481
    %v1766 = vpack.c.b16 %v1486, %v1482
    %v1767 = vpack.c.b16 %v1487, %v1483
    %v1768 = vpack.c.b16 %v1488, %v1484
    %v1769 = vpack.c.b16 %v1493, %v1489
    %v1770 = vpack.c.b16 %v1494, %v1490
    %v1771 = vpack.c.b16 %v1495, %v1491
    %v1772 = vpack.c.b16 %v1496, %v1492
    %v1773 = vpack.c.b16 %v1501, %v1497
    %v1774 = vpack.c.b16 %v1502, %v1498
    %v1775 = vpack.c.b16 %v1503, %v1499
    %v1776 = vpack.c.b16 %v1504, %v1500
    %v1777 = vpack.c.b16 %v1509, %v1505
    %v1778 = vpack.c.b16 %v1510, %v1506
    %v1779 = vpack.c.b16 %v1511, %v1507
    %v1780 = vpack.c.b16 %v1512, %v1508
    %v1781 = vpack.c.b16 %v1517, %v1513
    %v1782 = vpack.c.b16 %v1518, %v1514
    %v1783 = vpack.c.b16 %v1519, %v1515
    %v1784 = vpack.c.b16 %v1520, %v1516
    %v1785 = vpack.c.b16 %v1525, %v1521
    %v1786 = vpack.c.b16 %v1526, %v1522
    %v1787 = vpack.c.b16 %v1527, %v1523
    %v1788 = vpack.c.b16 %v1528, %v1524
    %v1789 = vpack.c.b16 %v1533, %v1529
    %v1790 = vpack.c.b16 %v1534, %v1530
    %v1791 = vpack.c.b16 %v1535, %v1531
    %v1792 = vpack.c.b16 %v1536, %v1532
    %2049 = vmatpush.bf16.msra.mxu0 %v1565
    %2050 = vmatpush.bf16.msra.mxu0 %v1561
    %2051 = vmatpush.bf16.msra.mxu0 %v1557
    %2052 = vmatpush.bf16.msra.mxu0 %v1553
    %2053 = vmatpush.bf16.msra.mxu0 %v1549
    %2054 = vmatpush.bf16.msra.mxu0 %v1545
    %2055 = vmatpush.bf16.msra.mxu0 %v1541
    %2056 = vmatpush.bf16.msra.mxu0 %v1537
    %2057 = vmatmul.bf16.gmra.mxu0 %v495
    %v2058 = vpop.f32.mrf.mxu0
    %v2059 = vadd.f32 %v761, %v2058
    %v2060 = vpop.f32.mrf.mxu0
    %2061 = vdwg.mxu0
    %2062 = vmatpush.bf16.msra.mxu0 %v1597
    %2063 = vmatpush.bf16.msra.mxu0 %v1593
    %2064 = vmatpush.bf16.msra.mxu0 %v1589
    %2065 = vmatpush.bf16.msra.mxu0 %v1585
    %2066 = vmatpush.bf16.msra.mxu0 %v1581
    %2067 = vmatpush.bf16.msra.mxu0 %v1577
    %2068 = vmatpush.bf16.msra.mxu0 %v1573
    %2069 = vmatpush.bf16.msra.mxu0 %v1569
    %2070 = vmatmul.bf16.gmra.mxu0 %v496
    %v2071 = vpop.f32.mrf.mxu0
    %v2072 = vadd.f32 %v2059, %v2071
    %v2073 = vpop.f32.mrf.mxu0
    %2074 = vdwg.mxu0
    %2075 = vmatpush.bf16.msra.mxu0 %v1629
    %2076 = vmatpush.bf16.msra.mxu0 %v1625
    %2077 = vmatpush.bf16.msra.mxu0 %v1621
    %2078 = vmatpush.bf16.msra.mxu0 %v1617
    %2079 = vmatpush.bf16.msra.mxu0 %v1613
    %2080 = vmatpush.bf16.msra.mxu0 %v1609
    %2081 = vmatpush.bf16.msra.mxu0 %v1605
    %2082 = vmatpush.bf16.msra.mxu0 %v1601
    %2083 = vmatmul.bf16.gmra.mxu0 %v497
    %v2084 = vpop.f32.mrf.mxu0
    %v2085 = vadd.f32 %v2072, %v2084
    %v2086 = vpop.f32.mrf.mxu0
    %2087 = vdwg.mxu0
    %2088 = vmatpush.bf16.msra.mxu0 %v1661
    %2089 = vmatpush.bf16.msra.mxu0 %v1657
    %2090 = vmatpush.bf16.msra.mxu0 %v1653
    %2091 = vmatpush.bf16.msra.mxu0 %v1649
    %2092 = vmatpush.bf16.msra.mxu0 %v1645
    %2093 = vmatpush.bf16.msra.mxu0 %v1641
    %2094 = vmatpush.bf16.msra.mxu0 %v1637
    %2095 = vmatpush.bf16.msra.mxu0 %v1633
    %2096 = vmatmul.bf16.gmra.mxu0 %v498
    %v2097 = vpop.f32.mrf.mxu0
    %v2098 = vadd.f32 %v2085, %v2097
    %v2099 = vpop.f32.mrf.mxu0
    %2100 = vdwg.mxu0
    %2101 = vmatpush.bf16.msra.mxu0 %v1693
    %2102 = vmatpush.bf16.msra.mxu0 %v1689
    %2103 = vmatpush.bf16.msra.mxu0 %v1685
    %2104 = vmatpush.bf16.msra.mxu0 %v1681
    %2105 = vmatpush.bf16.msra.mxu0 %v1677
    %2106 = vmatpush.bf16.msra.mxu0 %v1673
    %2107 = vmatpush.bf16.msra.mxu0 %v1669
    %2108 = vmatpush.bf16.msra.mxu0 %v1665
    %2109 = vmatmul.bf16.gmra.mxu0 %v499
    %v2110 = vpop.f32.mrf.mxu0
    %v2111 = vadd.f32 %v2098, %v2110
    %v2112 = vpop.f32.mrf.mxu0
    %2113 = vdwg.mxu0
    %2114 = vmatpush.bf16.msra.mxu0 %v1725
    %2115 = vmatpush.bf16.msra.mxu0 %v1721
    %2116 = vmatpush.bf16.msra.mxu0 %v1717
    %2117 = vmatpush.bf16.msra.mxu0 %v1713
    %2118 = vmatpush.bf16.msra.mxu0 %v1709
    %2119 = vmatpush.bf16.msra.mxu0 %v1705
    %2120 = vmatpush.bf16.msra.mxu0 %v1701
    %2121 = vmatpush.bf16.msra.mxu0 %v1697
    %2122 = vmatmul.bf16.gmra.mxu0 %v500
    %v2123 = vpop.f32.mrf.mxu0
    %v2124 = vadd.f32 %v2111, %v2123
    %v2125 = vpop.f32.mrf.mxu0
    %2126 = vdwg.mxu0
    %2127 = vmatpush.bf16.msra.mxu0 %v1757
    %2128 = vmatpush.bf16.msra.mxu0 %v1753
    %2129 = vmatpush.bf16.msra.mxu0 %v1749
    %2130 = vmatpush.bf16.msra.mxu0 %v1745
    %2131 = vmatpush.bf16.msra.mxu0 %v1741
    %2132 = vmatpush.bf16.msra.mxu0 %v1737
    %2133 = vmatpush.bf16.msra.mxu0 %v1733
    %2134 = vmatpush.bf16.msra.mxu0 %v1729
    %2135 = vmatmul.bf16.gmra.mxu0 %v501
    %v2136 = vpop.f32.mrf.mxu0
    %v2137 = vadd.f32 %v2124, %v2136
    %v2138 = vpop.f32.mrf.mxu0
    %2139 = vdwg.mxu0
    %2140 = vmatpush.bf16.msra.mxu0 %v1789
    %2141 = vmatpush.bf16.msra.mxu0 %v1785
    %2142 = vmatpush.bf16.msra.mxu0 %v1781
    %2143 = vmatpush.bf16.msra.mxu0 %v1777
    %2144 = vmatpush.bf16.msra.mxu0 %v1773
    %2145 = vmatpush.bf16.msra.mxu0 %v1769
    %2146 = vmatpush.bf16.msra.mxu0 %v1765
    %2147 = vmatpush.bf16.msra.mxu0 %v1761
    %2148 = vmatmul.bf16.gmra.mxu0 %v502
    %v2149 = vpop.f32.mrf.mxu0
    %v2150 = vadd.f32 %v2137, %v2149
    %v2151 = vpop.f32.mrf.mxu0
    %2152 = vdwg.mxu0
    %2153 = vmatpush.bf16.msra.mxu0 %v1566
    %2154 = vmatpush.bf16.msra.mxu0 %v1562
    %2155 = vmatpush.bf16.msra.mxu0 %v1558
    %2156 = vmatpush.bf16.msra.mxu0 %v1554
    %2157 = vmatpush.bf16.msra.mxu0 %v1550
    %2158 = vmatpush.bf16.msra.mxu0 %v1546
    %2159 = vmatpush.bf16.msra.mxu0 %v1542
    %2160 = vmatpush.bf16.msra.mxu0 %v1538
    %2161 = vmatmul.bf16.gmra.mxu0 %v495
    %v2162 = vpop.f32.mrf.mxu0
    %v2163 = vadd.f32 %v762, %v2162
    %v2164 = vpop.f32.mrf.mxu0
    %2165 = vdwg.mxu0
    %2166 = vmatpush.bf16.msra.mxu0 %v1598
    %2167 = vmatpush.bf16.msra.mxu0 %v1594
    %2168 = vmatpush.bf16.msra.mxu0 %v1590
    %2169 = vmatpush.bf16.msra.mxu0 %v1586
    %2170 = vmatpush.bf16.msra.mxu0 %v1582
    %2171 = vmatpush.bf16.msra.mxu0 %v1578
    %2172 = vmatpush.bf16.msra.mxu0 %v1574
    %2173 = vmatpush.bf16.msra.mxu0 %v1570
    %2174 = vmatmul.bf16.gmra.mxu0 %v496
    %v2175 = vpop.f32.mrf.mxu0
    %v2176 = vadd.f32 %v2163, %v2175
    %v2177 = vpop.f32.mrf.mxu0
    %2178 = vdwg.mxu0
    %2179 = vmatpush.bf16.msra.mxu0 %v1630
    %2180 = vmatpush.bf16.msra.mxu0 %v1626
    %2181 = vmatpush.bf16.msra.mxu0 %v1622
    %2182 = vmatpush.bf16.msra.mxu0 %v1618
    %2183 = vmatpush.bf16.msra.mxu0 %v1614
    %2184 = vmatpush.bf16.msra.mxu0 %v1610
    %2185 = vmatpush.bf16.msra.mxu0 %v1606
    %2186 = vmatpush.bf16.msra.mxu0 %v1602
    %2187 = vmatmul.bf16.gmra.mxu0 %v497
    %v2188 = vpop.f32.mrf.mxu0
    %v2189 = vadd.f32 %v2176, %v2188
    %v2190 = vpop.f32.mrf.mxu0
    %2191 = vdwg.mxu0
    %2192 = vmatpush.bf16.msra.mxu0 %v1662
    %2193 = vmatpush.bf16.msra.mxu0 %v1658
    %2194 = vmatpush.bf16.msra.mxu0 %v1654
    %2195 = vmatpush.bf16.msra.mxu0 %v1650
    %2196 = vmatpush.bf16.msra.mxu0 %v1646
    %2197 = vmatpush.bf16.msra.mxu0 %v1642
    %2198 = vmatpush.bf16.msra.mxu0 %v1638
    %2199 = vmatpush.bf16.msra.mxu0 %v1634
    %2200 = vmatmul.bf16.gmra.mxu0 %v498
    %v2201 = vpop.f32.mrf.mxu0
    %v2202 = vadd.f32 %v2189, %v2201
    %v2203 = vpop.f32.mrf.mxu0
    %2204 = vdwg.mxu0
    %2205 = vmatpush.bf16.msra.mxu0 %v1694
    %2206 = vmatpush.bf16.msra.mxu0 %v1690
    %2207 = vmatpush.bf16.msra.mxu0 %v1686
    %2208 = vmatpush.bf16.msra.mxu0 %v1682
    %2209 = vmatpush.bf16.msra.mxu0 %v1678
    %2210 = vmatpush.bf16.msra.mxu0 %v1674
    %2211 = vmatpush.bf16.msra.mxu0 %v1670
    %2212 = vmatpush.bf16.msra.mxu0 %v1666
    %2213 = vmatmul.bf16.gmra.mxu0 %v499
    %v2214 = vpop.f32.mrf.mxu0
    %v2215 = vadd.f32 %v2202, %v2214
    %v2216 = vpop.f32.mrf.mxu0
    %2217 = vdwg.mxu0
    %2218 = vmatpush.bf16.msra.mxu0 %v1726
    %2219 = vmatpush.bf16.msra.mxu0 %v1722
    %2220 = vmatpush.bf16.msra.mxu0 %v1718
    %2221 = vmatpush.bf16.msra.mxu0 %v1714
    %2222 = vmatpush.bf16.msra.mxu0 %v1710
    %2223 = vmatpush.bf16.msra.mxu0 %v1706
    %2224 = vmatpush.bf16.msra.mxu0 %v1702
    %2225 = vmatpush.bf16.msra.mxu0 %v1698
    %2226 = vmatmul.bf16.gmra.mxu0 %v500
    %v2227 = vpop.f32.mrf.mxu0
    %v2228 = vadd.f32 %v2215, %v2227
    %v2229 = vpop.f32.mrf.mxu0
    %2230 = vdwg.mxu0
    %2231 = vmatpush.bf16.msra.mxu0 %v1758
    %2232 = vmatpush.bf16.msra.mxu0 %v1754
    %2233 = vmatpush.bf16.msra.mxu0 %v1750
    %2234 = vmatpush.bf16.msra.mxu0 %v1746
    %2235 = vmatpush.bf16.msra.mxu0 %v1742
    %2236 = vmatpush.bf16.msra.mxu0 %v1738
    %2237 = vmatpush.bf16.msra.mxu0 %v1734
    %2238 = vmatpush.bf16.msra.mxu0 %v1730
    %2239 = vmatmul.bf16.gmra.mxu0 %v501
    %v2240 = vpop.f32.mrf.mxu0
    %v2241 = vadd.f32 %v2228, %v2240
    %v2242 = vpop.f32.mrf.mxu0
    %2243 = vdwg.mxu0
    %2244 = vmatpush.bf16.msra.mxu0 %v1790
    %2245 = vmatpush.bf16.msra.mxu0 %v1786
    %2246 = vmatpush.bf16.msra.mxu0 %v1782
    %2247 = vmatpush.bf16.msra.mxu0 %v1778
    %2248 = vmatpush.bf16.msra.mxu0 %v1774
    %2249 = vmatpush.bf16.msra.mxu0 %v1770
    %2250 = vmatpush.bf16.msra.mxu0 %v1766
    %2251 = vmatpush.bf16.msra.mxu0 %v1762
    %2252 = vmatmul.bf16.gmra.mxu0 %v502
    %v2253 = vpop.f32.mrf.mxu0
    %v2254 = vadd.f32 %v2241, %v2253
    %v2255 = vpop.f32.mrf.mxu0
    %2256 = vdwg.mxu0
    %2257 = vmatpush.bf16.msra.mxu0 %v1567
    %2258 = vmatpush.bf16.msra.mxu0 %v1563
    %2259 = vmatpush.bf16.msra.mxu0 %v1559
    %2260 = vmatpush.bf16.msra.mxu0 %v1555
    %2261 = vmatpush.bf16.msra.mxu0 %v1551
    %2262 = vmatpush.bf16.msra.mxu0 %v1547
    %2263 = vmatpush.bf16.msra.mxu0 %v1543
    %2264 = vmatpush.bf16.msra.mxu0 %v1539
    %2265 = vmatmul.bf16.gmra.mxu0 %v495
    %v2266 = vpop.f32.mrf.mxu0
    %v2267 = vadd.f32 %v763, %v2266
    %v2268 = vpop.f32.mrf.mxu0
    %2269 = vdwg.mxu0
    %2270 = vmatpush.bf16.msra.mxu0 %v1599
    %2271 = vmatpush.bf16.msra.mxu0 %v1595
    %2272 = vmatpush.bf16.msra.mxu0 %v1591
    %2273 = vmatpush.bf16.msra.mxu0 %v1587
    %2274 = vmatpush.bf16.msra.mxu0 %v1583
    %2275 = vmatpush.bf16.msra.mxu0 %v1579
    %2276 = vmatpush.bf16.msra.mxu0 %v1575
    %2277 = vmatpush.bf16.msra.mxu0 %v1571
    %2278 = vmatmul.bf16.gmra.mxu0 %v496
    %v2279 = vpop.f32.mrf.mxu0
    %v2280 = vadd.f32 %v2267, %v2279
    %v2281 = vpop.f32.mrf.mxu0
    %2282 = vdwg.mxu0
    %2283 = vmatpush.bf16.msra.mxu0 %v1631
    %2284 = vmatpush.bf16.msra.mxu0 %v1627
    %2285 = vmatpush.bf16.msra.mxu0 %v1623
    %2286 = vmatpush.bf16.msra.mxu0 %v1619
    %2287 = vmatpush.bf16.msra.mxu0 %v1615
    %2288 = vmatpush.bf16.msra.mxu0 %v1611
    %2289 = vmatpush.bf16.msra.mxu0 %v1607
    %2290 = vmatpush.bf16.msra.mxu0 %v1603
    %2291 = vmatmul.bf16.gmra.mxu0 %v497
    %v2292 = vpop.f32.mrf.mxu0
    %v2293 = vadd.f32 %v2280, %v2292
    %v2294 = vpop.f32.mrf.mxu0
    %2295 = vdwg.mxu0
    %2296 = vmatpush.bf16.msra.mxu0 %v1663
    %2297 = vmatpush.bf16.msra.mxu0 %v1659
    %2298 = vmatpush.bf16.msra.mxu0 %v1655
    %2299 = vmatpush.bf16.msra.mxu0 %v1651
    %2300 = vmatpush.bf16.msra.mxu0 %v1647
    %2301 = vmatpush.bf16.msra.mxu0 %v1643
    %2302 = vmatpush.bf16.msra.mxu0 %v1639
    %2303 = vmatpush.bf16.msra.mxu0 %v1635
    %2304 = vmatmul.bf16.gmra.mxu0 %v498
    %v2305 = vpop.f32.mrf.mxu0
    %v2306 = vadd.f32 %v2293, %v2305
    %v2307 = vpop.f32.mrf.mxu0
    %2308 = vdwg.mxu0
    %2309 = vmatpush.bf16.msra.mxu0 %v1695
    %2310 = vmatpush.bf16.msra.mxu0 %v1691
    %2311 = vmatpush.bf16.msra.mxu0 %v1687
    %2312 = vmatpush.bf16.msra.mxu0 %v1683
    %2313 = vmatpush.bf16.msra.mxu0 %v1679
    %2314 = vmatpush.bf16.msra.mxu0 %v1675
    %2315 = vmatpush.bf16.msra.mxu0 %v1671
    %2316 = vmatpush.bf16.msra.mxu0 %v1667
    %2317 = vmatmul.bf16.gmra.mxu0 %v499
    %v2318 = vpop.f32.mrf.mxu0
    %v2319 = vadd.f32 %v2306, %v2318
    %v2320 = vpop.f32.mrf.mxu0
    %2321 = vdwg.mxu0
    %2322 = vmatpush.bf16.msra.mxu0 %v1727
    %2323 = vmatpush.bf16.msra.mxu0 %v1723
    %2324 = vmatpush.bf16.msra.mxu0 %v1719
    %2325 = vmatpush.bf16.msra.mxu0 %v1715
    %2326 = vmatpush.bf16.msra.mxu0 %v1711
    %2327 = vmatpush.bf16.msra.mxu0 %v1707
    %2328 = vmatpush.bf16.msra.mxu0 %v1703
    %2329 = vmatpush.bf16.msra.mxu0 %v1699
    %2330 = vmatmul.bf16.gmra.mxu0 %v500
    %v2331 = vpop.f32.mrf.mxu0
    %v2332 = vadd.f32 %v2319, %v2331
    %v2333 = vpop.f32.mrf.mxu0
    %2334 = vdwg.mxu0
    %2335 = vmatpush.bf16.msra.mxu0 %v1759
    %2336 = vmatpush.bf16.msra.mxu0 %v1755
    %2337 = vmatpush.bf16.msra.mxu0 %v1751
    %2338 = vmatpush.bf16.msra.mxu0 %v1747
    %2339 = vmatpush.bf16.msra.mxu0 %v1743
    %2340 = vmatpush.bf16.msra.mxu0 %v1739
    %2341 = vmatpush.bf16.msra.mxu0 %v1735
    %2342 = vmatpush.bf16.msra.mxu0 %v1731
    %2343 = vmatmul.bf16.gmra.mxu0 %v501
    %v2344 = vpop.f32.mrf.mxu0
    %v2345 = vadd.f32 %v2332, %v2344
    %v2346 = vpop.f32.mrf.mxu0
    %2347 = vdwg.mxu0
    %2348 = vmatpush.bf16.msra.mxu0 %v1791
    %2349 = vmatpush.bf16.msra.mxu0 %v1787
    %2350 = vmatpush.bf16.msra.mxu0 %v1783
    %2351 = vmatpush.bf16.msra.mxu0 %v1779
    %2352 = vmatpush.bf16.msra.mxu0 %v1775
    %2353 = vmatpush.bf16.msra.mxu0 %v1771
    %2354 = vmatpush.bf16.msra.mxu0 %v1767
    %2355 = vmatpush.bf16.msra.mxu0 %v1763
    %2356 = vmatmul.bf16.gmra.mxu0 %v502
    %v2357 = vpop.f32.mrf.mxu0
    %v2358 = vadd.f32 %v2345, %v2357
    %v2359 = vpop.f32.mrf.mxu0
    %2360 = vdwg.mxu0
    %2361 = vmatpush.bf16.msra.mxu0 %v1568
    %2362 = vmatpush.bf16.msra.mxu0 %v1564
    %2363 = vmatpush.bf16.msra.mxu0 %v1560
    %2364 = vmatpush.bf16.msra.mxu0 %v1556
    %2365 = vmatpush.bf16.msra.mxu0 %v1552
    %2366 = vmatpush.bf16.msra.mxu0 %v1548
    %2367 = vmatpush.bf16.msra.mxu0 %v1544
    %2368 = vmatpush.bf16.msra.mxu0 %v1540
    %2369 = vmatmul.bf16.gmra.mxu0 %v495
    %v2370 = vpop.f32.mrf.mxu0
    %v2371 = vadd.f32 %v764, %v2370
    %v2372 = vpop.f32.mrf.mxu0
    %2373 = vdwg.mxu0
    %2374 = vmatpush.bf16.msra.mxu0 %v1600
    %2375 = vmatpush.bf16.msra.mxu0 %v1596
    %2376 = vmatpush.bf16.msra.mxu0 %v1592
    %2377 = vmatpush.bf16.msra.mxu0 %v1588
    %2378 = vmatpush.bf16.msra.mxu0 %v1584
    %2379 = vmatpush.bf16.msra.mxu0 %v1580
    %2380 = vmatpush.bf16.msra.mxu0 %v1576
    %2381 = vmatpush.bf16.msra.mxu0 %v1572
    %2382 = vmatmul.bf16.gmra.mxu0 %v496
    %v2383 = vpop.f32.mrf.mxu0
    %v2384 = vadd.f32 %v2371, %v2383
    %v2385 = vpop.f32.mrf.mxu0
    %2386 = vdwg.mxu0
    %2387 = vmatpush.bf16.msra.mxu0 %v1632
    %2388 = vmatpush.bf16.msra.mxu0 %v1628
    %2389 = vmatpush.bf16.msra.mxu0 %v1624
    %2390 = vmatpush.bf16.msra.mxu0 %v1620
    %2391 = vmatpush.bf16.msra.mxu0 %v1616
    %2392 = vmatpush.bf16.msra.mxu0 %v1612
    %2393 = vmatpush.bf16.msra.mxu0 %v1608
    %2394 = vmatpush.bf16.msra.mxu0 %v1604
    %2395 = vmatmul.bf16.gmra.mxu0 %v497
    %v2396 = vpop.f32.mrf.mxu0
    %v2397 = vadd.f32 %v2384, %v2396
    %v2398 = vpop.f32.mrf.mxu0
    %2399 = vdwg.mxu0
    %2400 = vmatpush.bf16.msra.mxu0 %v1664
    %2401 = vmatpush.bf16.msra.mxu0 %v1660
    %2402 = vmatpush.bf16.msra.mxu0 %v1656
    %2403 = vmatpush.bf16.msra.mxu0 %v1652
    %2404 = vmatpush.bf16.msra.mxu0 %v1648
    %2405 = vmatpush.bf16.msra.mxu0 %v1644
    %2406 = vmatpush.bf16.msra.mxu0 %v1640
    %2407 = vmatpush.bf16.msra.mxu0 %v1636
    %2408 = vmatmul.bf16.gmra.mxu0 %v498
    %v2409 = vpop.f32.mrf.mxu0
    %v2410 = vadd.f32 %v2397, %v2409
    %v2411 = vpop.f32.mrf.mxu0
    %2412 = vdwg.mxu0
    %2413 = vmatpush.bf16.msra.mxu0 %v1696
    %2414 = vmatpush.bf16.msra.mxu0 %v1692
    %2415 = vmatpush.bf16.msra.mxu0 %v1688
    %2416 = vmatpush.bf16.msra.mxu0 %v1684
    %2417 = vmatpush.bf16.msra.mxu0 %v1680
    %2418 = vmatpush.bf16.msra.mxu0 %v1676
    %2419 = vmatpush.bf16.msra.mxu0 %v1672
    %2420 = vmatpush.bf16.msra.mxu0 %v1668
    %2421 = vmatmul.bf16.gmra.mxu0 %v499
    %v2422 = vpop.f32.mrf.mxu0
    %v2423 = vadd.f32 %v2410, %v2422
    %v2424 = vpop.f32.mrf.mxu0
    %2425 = vdwg.mxu0
    %2426 = vmatpush.bf16.msra.mxu0 %v1728
    %2427 = vmatpush.bf16.msra.mxu0 %v1724
    %2428 = vmatpush.bf16.msra.mxu0 %v1720
    %2429 = vmatpush.bf16.msra.mxu0 %v1716
    %2430 = vmatpush.bf16.msra.mxu0 %v1712
    %2431 = vmatpush.bf16.msra.mxu0 %v1708
    %2432 = vmatpush.bf16.msra.mxu0 %v1704
    %2433 = vmatpush.bf16.msra.mxu0 %v1700
    %2434 = vmatmul.bf16.gmra.mxu0 %v500
    %v2435 = vpop.f32.mrf.mxu0
    %v2436 = vadd.f32 %v2423, %v2435
    %v2437 = vpop.f32.mrf.mxu0
    %2438 = vdwg.mxu0
    %2439 = vmatpush.bf16.msra.mxu0 %v1760
    %2440 = vmatpush.bf16.msra.mxu0 %v1756
    %2441 = vmatpush.bf16.msra.mxu0 %v1752
    %2442 = vmatpush.bf16.msra.mxu0 %v1748
    %2443 = vmatpush.bf16.msra.mxu0 %v1744
    %2444 = vmatpush.bf16.msra.mxu0 %v1740
    %2445 = vmatpush.bf16.msra.mxu0 %v1736
    %2446 = vmatpush.bf16.msra.mxu0 %v1732
    %2447 = vmatmul.bf16.gmra.mxu0 %v501
    %v2448 = vpop.f32.mrf.mxu0
    %v2449 = vadd.f32 %v2436, %v2448
    %v2450 = vpop.f32.mrf.mxu0
    %2451 = vdwg.mxu0
    %2452 = vmatpush.bf16.msra.mxu0 %v1792
    %2453 = vmatpush.bf16.msra.mxu0 %v1788
    %2454 = vmatpush.bf16.msra.mxu0 %v1784
    %2455 = vmatpush.bf16.msra.mxu0 %v1780
    %2456 = vmatpush.bf16.msra.mxu0 %v1776
    %2457 = vmatpush.bf16.msra.mxu0 %v1772
    %2458 = vmatpush.bf16.msra.mxu0 %v1768
    %2459 = vmatpush.bf16.msra.mxu0 %v1764
    %2460 = vmatmul.bf16.gmra.mxu0 %v502
    %v2461 = vpop.f32.mrf.mxu0
    %v2462 = vadd.f32 %v2449, %v2461
    %v2463 = vpop.f32.mrf.mxu0
    %2464 = vdwg.mxu0
    %v2465 = vadd.f32 %v2150, %v2254
    %v2466 = vadd.f32 %v2465, %v2358
    %v2467 = vadd.f32 %v2466, %v2462
    %2468 = vadd.xlane.f32.xlu0 %v2467
    %v2469 = vpop.xlane.xlu0 %2468
    %v2470 = vrcp.pop 512.0
    %v2471 = vmul.f32 512.0, %v2470
    %v2472 = vsub.f32 1.0, %v2471
    %v2473 = vmul.f32 %v2470, %v2472
    %v2474 = vadd.f32 %v2470, %v2473
    %vm2475 = vweird.f32 %v2470
    %v2476 = vsel %vm2475, %v2470, %v2474
    %v2477 = vmul.f32 %v2469, %v2476
    %v2478 = vmul.f32 %v2150, %v2150
    %v2479 = vmul.f32 %v2254, %v2254
    %v2480 = vmul.f32 %v2358, %v2358
    %v2481 = vmul.f32 %v2462, %v2462
    %v2482 = vadd.f32 %v2478, %v2479
    %v2483 = vadd.f32 %v2482, %v2480
    %v2484 = vadd.f32 %v2483, %v2481
    %2485 = vadd.xlane.f32.xlu0 %v2484
    %v2486 = vpop.xlane.xlu0 %2485
    %v2487 = vmul.f32 %v2486, %v2476
    %v2488 = vmul.f32 %v2477, %v2477
    %v2489 = vsub.f32 %v2487, %v2488
    %v2490 = vmax.f32 %v2489, 0.0
    %v2491 = vsub.f32 %v2150, %v2477
    %v2492 = vsub.f32 %v2254, %v2477
    %v2493 = vsub.f32 %v2358, %v2477
    %v2494 = vsub.f32 %v2462, %v2477
    %v2495 = vadd.f32 %v2490, 1e-05
    %v2496 = vrsqrt.pop %v2495
    %v2497 = vmul.f32 %v2496, %v2495
    %v2498 = vmul.f32 %v2497, %v2496
    %v2499 = vmul.f32 0.5, %v2498
    %v2500 = vsub.f32 1.5, %v2499
    %v2501 = vmul.f32 %v2496, %v2500
    %vm2502 = vweird.f32 %v2495
    %vm2503 = vweird.f32 %v2496
    %vm2504 = vmor %vm2502, %vm2503
    %v2505 = vsel %vm2504, %v2496, %v2501
    %v2506 = vmul.f32 %v2491, %v2505
    %v2507 = vmul.f32 %v2492, %v2505
    %v2508 = vmul.f32 %v2493, %v2505
    %v2509 = vmul.f32 %v2494, %v2505
    %v2510 = vld [vmem:[#allocation13] sm:$0xf]
    %v2512 = vperm.slane %v2510, 0
    %v2513 = vperm.slane %v2510, 1
    %v2514 = vperm.slane %v2510, 2
    %v2515 = vperm.slane %v2510, 3
    %v2520 = vmul.f32 %v2506, %v2512
    %v2521 = vmul.f32 %v2507, %v2513
    %v2522 = vmul.f32 %v2508, %v2514
    %v2523 = vmul.f32 %v2509, %v2515
    %v2524 = vld [vmem:[#allocation14] sm:$0xf]
    %v2526 = vperm.slane %v2524, 0
    %v2527 = vperm.slane %v2524, 1
    %v2528 = vperm.slane %v2524, 2
    %v2529 = vperm.slane %v2524, 3
    %v2534 = vadd.f32 %v2520, %v2526
    %v2535 = vadd.f32 %v2521, %v2527
    %v2536 = vadd.f32 %v2522, %v2528
    %v2537 = vadd.f32 %v2523, %v2529
    %2538 = vst [vmem:[#allocation16] sm:$0xff] %v2534
    %2539 = vst [vmem:[#allocation16 + $0x8] sm:$0xff] %v2535
    %2540 = vst [vmem:[#allocation16 + $0x10] sm:$0xff] %v2536
    %2541 = vst [vmem:[#allocation16 + $0x18] sm:$0xff] %v2537
    // Predicated region
    $region70: #{tpu_custom_call.1} parent=1 // pred_check
      _
    $region71: #{tpu_custom_call.1} parent=1 // pred_check_branch
      %2543 = sbr.rel (0) target = $region73
    $region72: #{tpu_custom_call.1} parent=1 // pred_region
      %2545 = vsyncadd [#allocation4], 0
      %s2547 = sshll.u32 [#allocation16], 4
      %s2548 = int_to_ptr.vmem [resolvable:$true] %s2547
      %s2549 = sshll.u32 %s9, 4
      %s2550 = int_to_ptr.hbm [resolvable:$true] %s2549
      %2552 = dma.vmem_to_hbm [thread:$0]  %s2548, 512, %s2550, [#allocation4]
    $region73: #{tpu_custom_call.1} parent=1 // pred_fallthru
      _
    // Predicated region
    $region74: #{tpu_custom_call.1} parent=1 // pred_check
      _
    $region75: #{tpu_custom_call.1} parent=1 // pred_check_branch
      %2554 = sbr.rel (0) target = $region77
    $region76: #{tpu_custom_call.1} parent=1 // pred_region
      %2556 = dma.done [#allocation4], 512
    $region77: #{tpu_custom_call.1} parent=1 // pred_fallthru
      _
    %2557 = vsyncpa [#allocation3], 1
    %2558 = vsyncpa [#allocation6], 1
    %2559 = vsyncpa [#allocation9], 1
    %2560 = vsyncpa [#allocation12], 1
    %2561 = vsyncpa [#allocation15], 1
    %2562 = vsyncpa [#allocation4], 1

</llo_original>
